<compile_context>
chip_gen: v5e
topology: v5e:2x2
jax: 0.10.0
libtpu: 0.0.40
codegen_flags: <defaults>
</compile_context>

<pallas_src>
import numpy as np
import jax
import jax.numpy as jnp
from jax.experimental import pallas as pl
from jax.experimental.pallas import tpu as pltpu


def _erf(v):
    """Abramowitz & Stegun 7.1.26 erf approximation (max abs err ~1.5e-7)."""
    p = 0.3275911
    a1 = 0.254829592
    a2 = -0.284496736
    a3 = 1.421413741
    a4 = -1.453152027
    a5 = 1.061405429
    av = jnp.abs(v)
    # approx reciprocal -> EUP slot instead of VALU divide
    t = pl.reciprocal(1.0 + p * av, approx=True)
    poly = ((((a5 * t + a4) * t + a3) * t + a2) * t + a1) * t
    e = 1.0 - poly * jnp.exp(-av * av)
    return jnp.where(v >= 0.0, e, -e)


def _gelu_exact(h):
    # GELU(x) = 0.5 * x * (1 + erf(x / sqrt(2)))   (PyTorch nn.GELU default)
    return 0.5 * h * (1.0 + _erf(h * 0.7071067811865476))


def mlp_block_kernel(x_ref, g_ref, beta_ref, w1_ref, b1_ref, w2_ref, b2_ref, o_ref):
    f32 = jnp.float32
    x = x_ref[...].astype(f32)                       # (TR, E)

    # --- LayerNorm over the feature (last) dim, eps = 1e-5 (PyTorch default).
    mu = jnp.mean(x, axis=-1, keepdims=True)
    xc = x - mu
    var = jnp.mean(xc * xc, axis=-1, keepdims=True)
    xn = xc * jax.lax.rsqrt(var + 1e-5)              # rsqrt -> EUP
    xn = xn * g_ref[...].astype(f32) + beta_ref[...].astype(f32)

    # --- Linear(E -> M) on the MXU: bf16 operands, f32 accumulation, exact GELU.
    h = jnp.dot(xn.astype(w1_ref.dtype), w1_ref[...], preferred_element_type=f32)
    h = h + b1_ref[...].astype(f32)
    h = _gelu_exact(h)
    # Dropout(p=0.1) is identity at inference.
    # TODO(synk): train-mode dropout (pltpu.prng_* masking) not implemented.

    # --- Linear(M -> E) on the MXU: bf16 operands, f32 accumulation.
    out = jnp.dot(h.astype(w2_ref.dtype), w2_ref[...], preferred_element_type=f32)
    out = out + b2_ref[...].astype(f32)
    o_ref[...] = out.astype(o_ref.dtype)


def _round_up(n, m):
    return ((n + m - 1) // m) * m


def _default_vmem_limit():
    """75% of physical per-core VMEM, capped at 100 MiB (v7x-safe, v6e-generous)."""
    try:
        vmem = pltpu.get_tpu_info().vmem_capacity_bytes
    except Exception:
        vmem = 64 * 1024 * 1024      # conservative fallback (v7x-sized)
    return min((vmem * 3) // 4, 100 * 1024 * 1024)


def _build_call(R_pad, E, M, row_tile, out_dtype, vmem_limit, single_buffer):
    def resident(shape):
        # Weights / params use a constant index_map -> stay pinned in VMEM.
        if single_buffer:
            return pl.BlockSpec(shape, lambda i: (0, 0), pipeline_mode=pl.Buffered(1))
        return pl.BlockSpec(shape, lambda i: (0, 0))

    grid_spec = pltpu.PrefetchScalarGridSpec(
        num_scalar_prefetch=0,
        grid=(R_pad // row_tile,),
        in_specs=[
            pl.BlockSpec((row_tile, E), lambda i: (i, 0)),  # x rows (streamed)
            resident((1, E)),                               # gamma
            resident((1, E)),                               # beta
            resident((E, M)),                               # w1 (bf16)
            resident((1, M)),                               # b1
            resident((M, E)),                               # w2 (bf16)
            resident((1, E)),                               # b2
        ],
        out_specs=pl.BlockSpec((row_tile, E), lambda i: (i, 0)),
    )
    return pl.pallas_call(
        mlp_block_kernel,
        out_shape=jax.ShapeDtypeStruct((R_pad, E), out_dtype),
        grid_spec=grid_spec,
        compiler_params=pltpu.CompilerParams(
            dimension_semantics=("parallel",),   # independent row tiles -> megacore
            vmem_limit_bytes=int(vmem_limit),
        ),
    )


def mlp_block(x, params, *, row_tile=None, weight_dtype=jnp.bfloat16):
    """Pallas wrapper reproducing MultiLayerPerceptronBlock.forward (inference)."""
    B, N, E = x.shape
    M = params["w1"].shape[1]

    # Lane-dense requirements (true for the real defaults E=768, M=3072).
    assert E % 128 == 0, f"embedding_dim must be a multiple of 128, got {E}"
    assert M % 128 == 0, f"mlp_size must be a multiple of 128, got {M}"

    R = B * N
    if row_tile is None:
        # Big tiles keep the 128/256-wide MXU busy; clamp for tiny inputs.
        row_tile = min(256, _round_up(R, 16))
    assert row_tile % 8 == 0, f"row_tile must be a multiple of 8, got {row_tile}"

    x2 = x.reshape(R, E)
    R_pad = _round_up(R, row_tile)
    if R_pad != R:
        # Ragged row counts (e.g. N=197 patches): zero-pad, slice off afterwards.
        x2 = jnp.pad(x2, ((0, R_pad - R), (0, 0)))

    # bf16 MXU operands (f32 accumulation in-kernel); biases / LN params stay f32.
    w1 = params["w1"].astype(weight_dtype)
    w2 = params["w2"].astype(weight_dtype)

    vmem_limit = _default_vmem_limit()
    args = (x2, params["gamma"], params["beta"], w1, params["b1"], w2, params["b2"])

    try:
        # Preferred: single-buffer the never-changing resident operands.
        out = _build_call(R_pad, E, M, row_tile, x.dtype, vmem_limit, True)(*args)
    except Exception:
        # Fallback for JAX versions without BlockSpec pipeline_mode support.
        out = _build_call(R_pad, E, M, row_tile, x.dtype, vmem_limit, False)(*args)

    return out[:R].reshape(B, N, E)


def reference(x, params):
    """Pure-JAX f32 reference mirroring the PyTorch forward (eval mode)."""
    mu = jnp.mean(x, axis=-1, keepdims=True)
    var = jnp.mean((x - mu) ** 2, axis=-1, keepdims=True)
    xn = (x - mu) / jnp.sqrt(var + 1e-5) * params["gamma"] + params["beta"]
    h = xn @ params["w1"] + params["b1"]
    h = jax.nn.gelu(h, approximate=False)            # exact erf GELU
    return h @ params["w2"] + params["b2"]


if __name__ == "__main__":
    # Small shapes consistent with the module (defaults 768/3072 shrunk).
    B, N = 2, 8            # batch, number of patches  -> 16 rows
    E = 256                # embedding_dim
    M = 512                # mlp_size

    key = jax.random.PRNGKey(0)
    keys = jax.random.split(key, 7)

    bound1 = float(1.0 / np.sqrt(E))
    bound2 = float(1.0 / np.sqrt(M))
    params = {
        # LayerNorm params (randomized around PyTorch's 1/0 init to exercise them).
        "gamma": 1.0 + 0.1 * jax.random.normal(keys[0], (1, E), jnp.float32),
        "beta": 0.1 * jax.random.normal(keys[1], (1, E), jnp.float32),
        # Linear layers stored as (in, out) so the kernel computes x @ W.
        "w1": jax.random.uniform(keys[2], (E, M), jnp.float32, -bound1, bound1),
        "b1": jax.random.uniform(keys[3], (1, M), jnp.float32, -bound1, bound1),
        "w2": jax.random.uniform(keys[4], (M, E), jnp.float32, -bound2, bound2),
        "b2": jax.random.uniform(keys[5], (1, E), jnp.float32, -bound2, bound2),
    }

    x = jax.random.normal(keys[6], (B, N, E), jnp.float32)

    out = mlp_block(x, params)
    out = jax.block_until_ready(out)

    ref = reference(x, params)
    assert out.shape == (B, N, E), out.shape
    # bf16 MXU operands (f32 accumulation) shift results ~1e-3 relative vs. the
    # pure-f32 PyTorch-style reference; tolerance loosened accordingly.
    np.testing.assert_allclose(np.asarray(out), np.asarray(ref),
                               rtol=2e-2, atol=2e-2)
    print("KERNEL_OK")
</pallas_src>

<mosaic_0001>
module attributes {stable_mosaic.version = 11 : i64} {
  func.func @mlp_block_kernel(%arg0: i32, %arg1: memref<16x256xf32, #tpu.memory_space<vmem>>, %arg2: memref<1x256xf32, #tpu.memory_space<vmem>>, %arg3: memref<1x256xf32, #tpu.memory_space<vmem>>, %arg4: memref<256x512xbf16, #tpu.memory_space<vmem>>, %arg5: memref<1x512xf32, #tpu.memory_space<vmem>>, %arg6: memref<512x256xbf16, #tpu.memory_space<vmem>>, %arg7: memref<1x256xf32, #tpu.memory_space<vmem>>, %arg8: memref<16x256xf32, #tpu.memory_space<vmem>>) attributes {dimension_semantics = [#tpu.dimension_semantics<parallel>], iteration_bounds = array<i64: 1>, scalar_prefetch = 0 : i64, scratch_operands = 0 : i64, tpu.core_type = #tpu.core_type<tc>, window_params = [{transform_indices = @transform_0, window_bounds = array<i64: 16, 256>}, {pipeline_mode = #tpu.pipeline_mode<synchronous>, transform_indices = @transform_1, window_bounds = array<i64: 1, 256>}, {pipeline_mode = #tpu.pipeline_mode<synchronous>, transform_indices = @transform_2, window_bounds = array<i64: 1, 256>}, {pipeline_mode = #tpu.pipeline_mode<synchronous>, transform_indices = @transform_3, window_bounds = array<i64: 256, 512>}, {pipeline_mode = #tpu.pipeline_mode<synchronous>, transform_indices = @transform_4, window_bounds = array<i64: 1, 512>}, {pipeline_mode = #tpu.pipeline_mode<synchronous>, transform_indices = @transform_5, window_bounds = array<i64: 512, 256>}, {pipeline_mode = #tpu.pipeline_mode<synchronous>, transform_indices = @transform_6, window_bounds = array<i64: 1, 256>}, {transform_indices = @transform_7, window_bounds = array<i64: 16, 256>}]} {
    %c0 = arith.constant 0 : index
    %c0_0 = arith.constant 0 : index
    %0 = vector.load %arg1[%c0, %c0_0] : memref<16x256xf32, #tpu.memory_space<vmem>>, vector<16x256xf32>
    %cst = arith.constant dense<0.000000e+00> : vector<16xf32>
    %1 = vector.multi_reduction <add>, %0, %cst [1] : vector<16x256xf32> to vector<16xf32>
    %2 = vector.shape_cast %1 : vector<16xf32> to vector<16x1xf32>
    %cst_1 = arith.constant 2.560000e+02 : f32
    %3 = vector.broadcast %cst_1 : f32 to vector<16x1xf32>
    %4 = arith.divf %2, %3 : vector<16x1xf32>
    %5 = vector.broadcast %4 : vector<16x1xf32> to vector<16x256xf32>
    %6 = arith.subf %0, %5 : vector<16x256xf32>
    %7 = arith.mulf %6, %6 : vector<16x256xf32>
    %cst_2 = arith.constant dense<0.000000e+00> : vector<16xf32>
    %8 = vector.multi_reduction <add>, %7, %cst_2 [1] : vector<16x256xf32> to vector<16xf32>
    %9 = vector.shape_cast %8 : vector<16xf32> to vector<16x1xf32>
    %cst_3 = arith.constant 2.560000e+02 : f32
    %10 = vector.broadcast %cst_3 : f32 to vector<16x1xf32>
    %11 = arith.divf %9, %10 : vector<16x1xf32>
    %cst_4 = arith.constant 9.99999974E-6 : f32
    %12 = vector.broadcast %cst_4 : f32 to vector<16x1xf32>
    %13 = arith.addf %11, %12 : vector<16x1xf32>
    %14 = math.rsqrt %13 : vector<16x1xf32>
    %15 = vector.broadcast %14 : vector<16x1xf32> to vector<16x256xf32>
    %16 = arith.mulf %6, %15 : vector<16x256xf32>
    %c0_5 = arith.constant 0 : index
    %c0_6 = arith.constant 0 : index
    %17 = vector.load %arg2[%c0_5, %c0_6] : memref<1x256xf32, #tpu.memory_space<vmem>>, vector<1x256xf32>
    %18 = vector.broadcast %17 : vector<1x256xf32> to vector<16x256xf32>
    %19 = arith.mulf %16, %18 : vector<16x256xf32>
    %c0_7 = arith.constant 0 : index
    %c0_8 = arith.constant 0 : index
    %20 = vector.load %arg3[%c0_7, %c0_8] : memref<1x256xf32, #tpu.memory_space<vmem>>, vector<1x256xf32>
    %21 = vector.broadcast %20 : vector<1x256xf32> to vector<16x256xf32>
    %22 = arith.addf %19, %21 : vector<16x256xf32>
    %23 = arith.truncf %22 : vector<16x256xf32> to vector<16x256xbf16>
    %c0_9 = arith.constant 0 : index
    %c0_10 = arith.constant 0 : index
    %24 = vector.load %arg4[%c0_9, %c0_10] : memref<256x512xbf16, #tpu.memory_space<vmem>>, vector<256x512xbf16>
    %cst_11 = arith.constant dense<0.000000e+00> : vector<16x512xf32>
    %25 = tpu.matmul %23, %24, %cst_11 {dimension_numbers = #tpu.dot_dimension_numbers<[1], [0], [0], [1], [0, 0, 1, 1], [], []>} : vector<16x256xbf16>, vector<256x512xbf16>, vector<16x512xf32> -> vector<16x512xf32>
    %c0_12 = arith.constant 0 : index
    %c0_13 = arith.constant 0 : index
    %26 = vector.load %arg5[%c0_12, %c0_13] : memref<1x512xf32, #tpu.memory_space<vmem>>, vector<1x512xf32>
    %27 = vector.broadcast %26 : vector<1x512xf32> to vector<16x512xf32>
    %28 = arith.addf %25, %27 : vector<16x512xf32>
    %cst_14 = arith.constant 5.000000e-01 : f32
    %29 = vector.broadcast %cst_14 : f32 to vector<16x512xf32>
    %30 = arith.mulf %29, %28 : vector<16x512xf32>
    %cst_15 = arith.constant 0.707106769 : f32
    %31 = vector.broadcast %cst_15 : f32 to vector<16x512xf32>
    %32 = arith.mulf %28, %31 : vector<16x512xf32>
    %33 = math.absf %32 : vector<16x512xf32>
    %cst_16 = arith.constant 0.327591091 : f32
    %34 = vector.broadcast %cst_16 : f32 to vector<16x512xf32>
    %35 = arith.mulf %34, %33 : vector<16x512xf32>
    %cst_17 = arith.constant 1.000000e+00 : f32
    %36 = vector.broadcast %cst_17 : f32 to vector<16x512xf32>
    %37 = arith.addf %36, %35 : vector<16x512xf32>
    %38 = tpu.reciprocal %37 {approx = true} : vector<16x512xf32> -> vector<16x512xf32>
    %cst_18 = arith.constant 1.06140542 : f32
    %39 = vector.broadcast %cst_18 : f32 to vector<16x512xf32>
    %40 = arith.mulf %39, %38 : vector<16x512xf32>
    %cst_19 = arith.constant -1.45315206 : f32
    %41 = vector.broadcast %cst_19 : f32 to vector<16x512xf32>
    %42 = arith.addf %40, %41 : vector<16x512xf32>
    %43 = arith.mulf %42, %38 : vector<16x512xf32>
    %cst_20 = arith.constant 1.42141378 : f32
    %44 = vector.broadcast %cst_20 : f32 to vector<16x512xf32>
    %45 = arith.addf %43, %44 : vector<16x512xf32>
    %46 = arith.mulf %45, %38 : vector<16x512xf32>
    %cst_21 = arith.constant -0.284496725 : f32
    %47 = vector.broadcast %cst_21 : f32 to vector<16x512xf32>
    %48 = arith.addf %46, %47 : vector<16x512xf32>
    %49 = arith.mulf %48, %38 : vector<16x512xf32>
    %cst_22 = arith.constant 0.254829586 : f32
    %50 = vector.broadcast %cst_22 : f32 to vector<16x512xf32>
    %51 = arith.addf %49, %50 : vector<16x512xf32>
    %52 = arith.mulf %51, %38 : vector<16x512xf32>
    %cst_23 = arith.constant 0.000000e+00 : f32
    %53 = vector.broadcast %cst_23 : f32 to vector<16x512xf32>
    %54 = arith.subf %53, %33 : vector<16x512xf32>
    %55 = arith.mulf %54, %33 : vector<16x512xf32>
    %56 = math.exp %55 : vector<16x512xf32>
    %57 = arith.mulf %52, %56 : vector<16x512xf32>
    %cst_24 = arith.constant 1.000000e+00 : f32
    %58 = vector.broadcast %cst_24 : f32 to vector<16x512xf32>
    %59 = arith.subf %58, %57 : vector<16x512xf32>
    %cst_25 = arith.constant 0.000000e+00 : f32
    %60 = vector.broadcast %cst_25 : f32 to vector<16x512xf32>
    %61 = arith.cmpf oge, %32, %60 : vector<16x512xf32>
    %cst_26 = arith.constant 0.000000e+00 : f32
    %62 = vector.broadcast %cst_26 : f32 to vector<16x512xf32>
    %63 = arith.subf %62, %59 : vector<16x512xf32>
    %64 = arith.select %61, %59, %63 : vector<16x512xi1>, vector<16x512xf32>
    %cst_27 = arith.constant 1.000000e+00 : f32
    %65 = vector.broadcast %cst_27 : f32 to vector<16x512xf32>
    %66 = arith.addf %65, %64 : vector<16x512xf32>
    %67 = arith.mulf %30, %66 : vector<16x512xf32>
    %68 = arith.truncf %67 : vector<16x512xf32> to vector<16x512xbf16>
    %c0_28 = arith.constant 0 : index
    %c0_29 = arith.constant 0 : index
    %69 = vector.load %arg6[%c0_28, %c0_29] : memref<512x256xbf16, #tpu.memory_space<vmem>>, vector<512x256xbf16>
    %cst_30 = arith.constant dense<0.000000e+00> : vector<16x256xf32>
    %70 = tpu.matmul %68, %69, %cst_30 {dimension_numbers = #tpu.dot_dimension_numbers<[1], [0], [0], [1], [0, 0, 1, 1], [], []>} : vector<16x512xbf16>, vector<512x256xbf16>, vector<16x256xf32> -> vector<16x256xf32>
    %c0_31 = arith.constant 0 : index
    %c0_32 = arith.constant 0 : index
    %71 = vector.load %arg7[%c0_31, %c0_32] : memref<1x256xf32, #tpu.memory_space<vmem>>, vector<1x256xf32>
    %72 = vector.broadcast %71 : vector<1x256xf32> to vector<16x256xf32>
    %73 = arith.addf %70, %72 : vector<16x256xf32>
    %c0_33 = arith.constant 0 : index
    %c0_34 = arith.constant 0 : index
    %74 = vector.load %arg8[%c0_33, %c0_34] : memref<16x256xf32, #tpu.memory_space<vmem>>, vector<16x256xf32>
    tpu.vector_store %arg8[%c0_33, %c0_34], %73 {strides = array<i32>} : memref<16x256xf32, #tpu.memory_space<vmem>>, vector<16x256xf32>,
    return
  }
  func.func @transform_0(%arg0: i32) -> (i32, i32) {
    %c0_i32 = arith.constant 0 : i32
    %c0_i32_0 = arith.constant 0 : i32
    return %arg0, %c0_i32 : i32, i32
  }
  func.func @transform_1(%arg0: i32) -> (i32, i32) {
    %c0_i32 = arith.constant 0 : i32
    %c0_i32_0 = arith.constant 0 : i32
    %c0_i32_1 = arith.constant 0 : i32
    return %c0_i32, %c0_i32_0 : i32, i32
  }
  func.func @transform_2(%arg0: i32) -> (i32, i32) {
    %c0_i32 = arith.constant 0 : i32
    %c0_i32_0 = arith.constant 0 : i32
    %c0_i32_1 = arith.constant 0 : i32
    return %c0_i32, %c0_i32_0 : i32, i32
  }
  func.func @transform_3(%arg0: i32) -> (i32, i32) {
    %c0_i32 = arith.constant 0 : i32
    %c0_i32_0 = arith.constant 0 : i32
    %c0_i32_1 = arith.constant 0 : i32
    return %c0_i32, %c0_i32_0 : i32, i32
  }
  func.func @transform_4(%arg0: i32) -> (i32, i32) {
    %c0_i32 = arith.constant 0 : i32
    %c0_i32_0 = arith.constant 0 : i32
    %c0_i32_1 = arith.constant 0 : i32
    return %c0_i32, %c0_i32_0 : i32, i32
  }
  func.func @transform_5(%arg0: i32) -> (i32, i32) {
    %c0_i32 = arith.constant 0 : i32
    %c0_i32_0 = arith.constant 0 : i32
    %c0_i32_1 = arith.constant 0 : i32
    return %c0_i32, %c0_i32_0 : i32, i32
  }
  func.func @transform_6(%arg0: i32) -> (i32, i32) {
    %c0_i32 = arith.constant 0 : i32
    %c0_i32_0 = arith.constant 0 : i32
    %c0_i32_1 = arith.constant 0 : i32
    return %c0_i32, %c0_i32_0 : i32, i32
  }
  func.func @transform_7(%arg0: i32) -> (i32, i32) {
    %c0_i32 = arith.constant 0 : i32
    %c0_i32_0 = arith.constant 0 : i32
    return %arg0, %c0_i32 : i32, i32
  }
}

module attributes {stable_mosaic.version = 11 : i64} {
  func.func @mlp_block_kernel(%arg0: i32, %arg1: memref<16x256xf32, #tpu.memory_space<vmem>>, %arg2: memref<1x256xf32, #tpu.memory_space<vmem>>, %arg3: memref<1x256xf32, #tpu.memory_space<vmem>>, %arg4: memref<256x512xbf16, #tpu.memory_space<vmem>>, %arg5: memref<1x512xf32, #tpu.memory_space<vmem>>, %arg6: memref<512x256xbf16, #tpu.memory_space<vmem>>, %arg7: memref<1x256xf32, #tpu.memory_space<vmem>>, %arg8: memref<16x256xf32, #tpu.memory_space<vmem>>) attributes {dimension_semantics = [#tpu.dimension_semantics<parallel>], iteration_bounds = array<i64: 1>, scalar_prefetch = 0 : i64, scratch_operands = 0 : i64, tpu.core_type = #tpu.core_type<tc>, window_params = [{transform_indices = @transform_0, window_bounds = array<i64: 16, 256>}, {pipeline_mode = #tpu.pipeline_mode<synchronous>, transform_indices = @transform_1, window_bounds = array<i64: 1, 256>}, {pipeline_mode = #tpu.pipeline_mode<synchronous>, transform_indices = @transform_2, window_bounds = array<i64: 1, 256>}, {pipeline_mode = #tpu.pipeline_mode<synchronous>, transform_indices = @transform_3, window_bounds = array<i64: 256, 512>}, {pipeline_mode = #tpu.pipeline_mode<synchronous>, transform_indices = @transform_4, window_bounds = array<i64: 1, 512>}, {pipeline_mode = #tpu.pipeline_mode<synchronous>, transform_indices = @transform_5, window_bounds = array<i64: 512, 256>}, {pipeline_mode = #tpu.pipeline_mode<synchronous>, transform_indices = @transform_6, window_bounds = array<i64: 1, 256>}, {transform_indices = @transform_7, window_bounds = array<i64: 16, 256>}]} {
    %c0 = arith.constant 0 : index
    %c0_0 = arith.constant 0 : index
    %0 = vector.load %arg1[%c0, %c0_0] : memref<16x256xf32, #tpu.memory_space<vmem>>, vector<16x256xf32>
    %cst = arith.constant dense<0.000000e+00> : vector<16xf32>
    %1 = vector.multi_reduction <add>, %0, %cst [1] : vector<16x256xf32> to vector<16xf32>
    %2 = vector.shape_cast %1 : vector<16xf32> to vector<16x1xf32>
    %cst_1 = arith.constant 2.560000e+02 : f32
    %3 = vector.broadcast %cst_1 : f32 to vector<16x1xf32>
    %4 = arith.divf %2, %3 : vector<16x1xf32>
    %5 = vector.broadcast %4 : vector<16x1xf32> to vector<16x256xf32>
    %6 = arith.subf %0, %5 : vector<16x256xf32>
    %7 = arith.mulf %6, %6 : vector<16x256xf32>
    %cst_2 = arith.constant dense<0.000000e+00> : vector<16xf32>
    %8 = vector.multi_reduction <add>, %7, %cst_2 [1] : vector<16x256xf32> to vector<16xf32>
    %9 = vector.shape_cast %8 : vector<16xf32> to vector<16x1xf32>
    %cst_3 = arith.constant 2.560000e+02 : f32
    %10 = vector.broadcast %cst_3 : f32 to vector<16x1xf32>
    %11 = arith.divf %9, %10 : vector<16x1xf32>
    %cst_4 = arith.constant 9.99999974E-6 : f32
    %12 = vector.broadcast %cst_4 : f32 to vector<16x1xf32>
    %13 = arith.addf %11, %12 : vector<16x1xf32>
    %14 = math.rsqrt %13 : vector<16x1xf32>
    %15 = vector.broadcast %14 : vector<16x1xf32> to vector<16x256xf32>
    %16 = arith.mulf %6, %15 : vector<16x256xf32>
    %c0_5 = arith.constant 0 : index
    %c0_6 = arith.constant 0 : index
    %17 = vector.load %arg2[%c0_5, %c0_6] : memref<1x256xf32, #tpu.memory_space<vmem>>, vector<1x256xf32>
    %18 = vector.broadcast %17 : vector<1x256xf32> to vector<16x256xf32>
    %19 = arith.mulf %16, %18 : vector<16x256xf32>
    %c0_7 = arith.constant 0 : index
    %c0_8 = arith.constant 0 : index
    %20 = vector.load %arg3[%c0_7, %c0_8] : memref<1x256xf32, #tpu.memory_space<vmem>>, vector<1x256xf32>
    %21 = vector.broadcast %20 : vector<1x256xf32> to vector<16x256xf32>
    %22 = arith.addf %19, %21 : vector<16x256xf32>
    %23 = arith.truncf %22 : vector<16x256xf32> to vector<16x256xbf16>
    %c0_9 = arith.constant 0 : index
    %c0_10 = arith.constant 0 : index
    %24 = vector.load %arg4[%c0_9, %c0_10] : memref<256x512xbf16, #tpu.memory_space<vmem>>, vector<256x512xbf16>
    %cst_11 = arith.constant dense<0.000000e+00> : vector<16x512xf32>
    %25 = tpu.matmul %23, %24, %cst_11 {dimension_numbers = #tpu.dot_dimension_numbers<[1], [0], [0], [1], [0, 0, 1, 1], [], []>} : vector<16x256xbf16>, vector<256x512xbf16>, vector<16x512xf32> -> vector<16x512xf32>
    %c0_12 = arith.constant 0 : index
    %c0_13 = arith.constant 0 : index
    %26 = vector.load %arg5[%c0_12, %c0_13] : memref<1x512xf32, #tpu.memory_space<vmem>>, vector<1x512xf32>
    %27 = vector.broadcast %26 : vector<1x512xf32> to vector<16x512xf32>
    %28 = arith.addf %25, %27 : vector<16x512xf32>
    %cst_14 = arith.constant 5.000000e-01 : f32
    %29 = vector.broadcast %cst_14 : f32 to vector<16x512xf32>
    %30 = arith.mulf %29, %28 : vector<16x512xf32>
    %cst_15 = arith.constant 0.707106769 : f32
    %31 = vector.broadcast %cst_15 : f32 to vector<16x512xf32>
    %32 = arith.mulf %28, %31 : vector<16x512xf32>
    %33 = math.absf %32 : vector<16x512xf32>
    %cst_16 = arith.constant 0.327591091 : f32
    %34 = vector.broadcast %cst_16 : f32 to vector<16x512xf32>
    %35 = arith.mulf %34, %33 : vector<16x512xf32>
    %cst_17 = arith.constant 1.000000e+00 : f32
    %36 = vector.broadcast %cst_17 : f32 to vector<16x512xf32>
    %37 = arith.addf %36, %35 : vector<16x512xf32>
    %38 = tpu.reciprocal %37 {approx = true} : vector<16x512xf32> -> vector<16x512xf32>
    %cst_18 = arith.constant 1.06140542 : f32
    %39 = vector.broadcast %cst_18 : f32 to vector<16x512xf32>
    %40 = arith.mulf %39, %38 : vector<16x512xf32>
    %cst_19 = arith.constant -1.45315206 : f32
    %41 = vector.broadcast %cst_19 : f32 to vector<16x512xf32>
    %42 = arith.addf %40, %41 : vector<16x512xf32>
    %43 = arith.mulf %42, %38 : vector<16x512xf32>
    %cst_20 = arith.constant 1.42141378 : f32
    %44 = vector.broadcast %cst_20 : f32 to vector<16x512xf32>
    %45 = arith.addf %43, %44 : vector<16x512xf32>
    %46 = arith.mulf %45, %38 : vector<16x512xf32>
    %cst_21 = arith.constant -0.284496725 : f32
    %47 = vector.broadcast %cst_21 : f32 to vector<16x512xf32>
    %48 = arith.addf %46, %47 : vector<16x512xf32>
    %49 = arith.mulf %48, %38 : vector<16x512xf32>
    %cst_22 = arith.constant 0.254829586 : f32
    %50 = vector.broadcast %cst_22 : f32 to vector<16x512xf32>
    %51 = arith.addf %49, %50 : vector<16x512xf32>
    %52 = arith.mulf %51, %38 : vector<16x512xf32>
    %cst_23 = arith.constant 0.000000e+00 : f32
    %53 = vector.broadcast %cst_23 : f32 to vector<16x512xf32>
    %54 = arith.subf %53, %33 : vector<16x512xf32>
    %55 = arith.mulf %54, %33 : vector<16x512xf32>
    %56 = math.exp %55 : vector<16x512xf32>
    %57 = arith.mulf %52, %56 : vector<16x512xf32>
    %cst_24 = arith.constant 1.000000e+00 : f32
    %58 = vector.broadcast %cst_24 : f32 to vector<16x512xf32>
    %59 = arith.subf %58, %57 : vector<16x512xf32>
    %cst_25 = arith.constant 0.000000e+00 : f32
    %60 = vector.broadcast %cst_25 : f32 to vector<16x512xf32>
    %61 = arith.cmpf oge, %32, %60 : vector<16x512xf32>
    %cst_26 = arith.constant 0.000000e+00 : f32
    %62 = vector.broadcast %cst_26 : f32 to vector<16x512xf32>
    %63 = arith.subf %62, %59 : vector<16x512xf32>
    %64 = arith.select %61, %59, %63 : vector<16x512xi1>, vector<16x512xf32>
    %cst_27 = arith.constant 1.000000e+00 : f32
    %65 = vector.broadcast %cst_27 : f32 to vector<16x512xf32>
    %66 = arith.addf %65, %64 : vector<16x512xf32>
    %67 = arith.mulf %30, %66 : vector<16x512xf32>
    %68 = arith.truncf %67 : vector<16x512xf32> to vector<16x512xbf16>
    %c0_28 = arith.constant 0 : index
    %c0_29 = arith.constant 0 : index
    %69 = vector.load %arg6[%c0_28, %c0_29] : memref<512x256xbf16, #tpu.memory_space<vmem>>, vector<512x256xbf16>
    %cst_30 = arith.constant dense<0.000000e+00> : vector<16x256xf32>
    %70 = tpu.matmul %68, %69, %cst_30 {dimension_numbers = #tpu.dot_dimension_numbers<[1], [0], [0], [1], [0, 0, 1, 1], [], []>} : vector<16x512xbf16>, vector<512x256xbf16>, vector<16x256xf32> -> vector<16x256xf32>
    %c0_31 = arith.constant 0 : index
    %c0_32 = arith.constant 0 : index
    %71 = vector.load %arg7[%c0_31, %c0_32] : memref<1x256xf32, #tpu.memory_space<vmem>>, vector<1x256xf32>
    %72 = vector.broadcast %71 : vector<1x256xf32> to vector<16x256xf32>
    %73 = arith.addf %70, %72 : vector<16x256xf32>
    %c0_33 = arith.constant 0 : index
    %c0_34 = arith.constant 0 : index
    %74 = vector.load %arg8[%c0_33, %c0_34] : memref<16x256xf32, #tpu.memory_space<vmem>>, vector<16x256xf32>
    tpu.vector_store %arg8[%c0_33, %c0_34], %73 {strides = array<i32>} : memref<16x256xf32, #tpu.memory_space<vmem>>, vector<16x256xf32>,
    return
  }
  func.func @transform_0(%arg0: i32) -> (i32, i32) {
    %c0_i32 = arith.constant 0 : i32
    %c0_i32_0 = arith.constant 0 : i32
    return %arg0, %c0_i32 : i32, i32
  }
  func.func @transform_1(%arg0: i32) -> (i32, i32) {
    %c0_i32 = arith.constant 0 : i32
    %c0_i32_0 = arith.constant 0 : i32
    %c0_i32_1 = arith.constant 0 : i32
    return %c0_i32, %c0_i32_0 : i32, i32
  }
  func.func @transform_2(%arg0: i32) -> (i32, i32) {
    %c0_i32 = arith.constant 0 : i32
    %c0_i32_0 = arith.constant 0 : i32
    %c0_i32_1 = arith.constant 0 : i32
    return %c0_i32, %c0_i32_0 : i32, i32
  }
  func.func @transform_3(%arg0: i32) -> (i32, i32) {
    %c0_i32 = arith.constant 0 : i32
    %c0_i32_0 = arith.constant 0 : i32
    %c0_i32_1 = arith.constant 0 : i32
    return %c0_i32, %c0_i32_0 : i32, i32
  }
  func.func @transform_4(%arg0: i32) -> (i32, i32) {
    %c0_i32 = arith.constant 0 : i32
    %c0_i32_0 = arith.constant 0 : i32
    %c0_i32_1 = arith.constant 0 : i32
    return %c0_i32, %c0_i32_0 : i32, i32
  }
  func.func @transform_5(%arg0: i32) -> (i32, i32) {
    %c0_i32 = arith.constant 0 : i32
    %c0_i32_0 = arith.constant 0 : i32
    %c0_i32_1 = arith.constant 0 : i32
    return %c0_i32, %c0_i32_0 : i32, i32
  }
  func.func @transform_6(%arg0: i32) -> (i32, i32) {
    %c0_i32 = arith.constant 0 : i32
    %c0_i32_0 = arith.constant 0 : i32
    %c0_i32_1 = arith.constant 0 : i32
    return %c0_i32, %c0_i32_0 : i32, i32
  }
  func.func @transform_7(%arg0: i32) -> (i32, i32) {
    %c0_i32 = arith.constant 0 : i32
    %c0_i32_0 = arith.constant 0 : i32
    return %arg0, %c0_i32 : i32, i32
  }
}

</mosaic_0001>

<llo_original>
// kernel: tpu_custom_call.1
$region0: #{tpu_custom_call.1}
  #allocation0 [shape = 'u32[]', space=smem, size = 0x4, offset = 0x4, fixed_abs, tag = 'smem constant byte address 0x4 - core index']
  #allocation1 [shape = 'u32[72,128]{1,0:T(1,128)}', space=vmem, size = 0x9000, scoped, tag = 'internal scratch']
  %s0 = inlined_call_operand.hbm [shape: f32[16,256], index: 0, kind: input, shape index: {}]
  %s1 = inlined_call_operand.hbm [shape: f32[1,256], index: 1, kind: input, shape index: {}]
  %s2 = inlined_call_operand.hbm [shape: f32[1,256], index: 2, kind: input, shape index: {}]
  %s3 = inlined_call_operand.hbm [shape: bf16[256,512], index: 3, kind: input, shape index: {}]
  %s4 = inlined_call_operand.hbm [shape: f32[1,512], index: 4, kind: input, shape index: {}]
  %s5 = inlined_call_operand.hbm [shape: bf16[512,256], index: 5, kind: input, shape index: {}]
  %s6 = inlined_call_operand.vmem [shape: f32[1,256], index: 6, kind: input, shape index: {}]
  %s7 = inlined_call_operand.hbm [shape: f32[16,256], index: 7, kind: output, shape index: {}]
  %s8 = sld [smem:[#allocation0]]
  $region62: #{tpu_custom_call.1} parent=0
    _
  %s10 = ssub.s32 1, %s8
  %s11 = scalar_select 0, %s10, %s8
  $region1: #{tpu_custom_call.1} parent=0
    #allocation2 [shape = 'u8[16384]{0}', space=vmem, size = 0x4000, scoped, tag = 'input window, operand 0, single buffered']
    #allocation3 [shape = 's32[1]{0}', space=sflag, size = 0x4, scoped, tag = 'scoped memory for tpu_custom_call.1']
    #allocation4 [shape = 's32[1]{0}', space=sflag, size = 0x4, scoped, tag = 'scoped memory for tpu_custom_call.1']
    #allocation5 [shape = 'u8[1024]{0}', space=vmem, size = 0x400, scoped, tag = 'input window, operand 1, single buffered']
    #allocation6 [shape = 's32[1]{0}', space=sflag, size = 0x4, scoped, tag = 'scoped memory for tpu_custom_call.1']
    #allocation7 [shape = 'u8[1024]{0}', space=vmem, size = 0x400, scoped, tag = 'input window, operand 2, single buffered']
    #allocation8 [shape = 'u8[262144]{0}', space=vmem, size = 0x40000, scoped, tag = 'input window, operand 3, single buffered']
    #allocation9 [shape = 's32[1]{0}', space=sflag, size = 0x4, scoped, tag = 'scoped memory for tpu_custom_call.1']
    #allocation10 [shape = 'u8[2048]{0}', space=vmem, size = 0x800, scoped, tag = 'input window, operand 4, single buffered']
    #allocation11 [shape = 'u8[262144]{0}', space=vmem, size = 0x40000, scoped, tag = 'input window, operand 5, single buffered']
    #allocation12 [shape = 's32[1]{0}', space=sflag, size = 0x4, scoped, tag = 'scoped memory for tpu_custom_call.1']
    #allocation13 [shape = 'u8[16384]{0}', space=vmem, size = 0x4000, scoped, tag = 'output window, operand 0, single buffered']
    %12 = vsyncpa [#allocation3], 0
    %13 = vsyncpa [#allocation6], 0
    %14 = vsyncpa [#allocation9], 0
    %15 = vsyncpa [#allocation12], 0
    %16 = vsyncpa [#allocation4], 0
    // Predicated region
    $region2: #{tpu_custom_call.1} parent=1 // pred_check
      _
    $region3: #{tpu_custom_call.1} parent=1 // pred_check_branch
      %18 = sbr.rel (0) target = $region5
    $region4: #{tpu_custom_call.1} parent=1 // pred_region
      %20 = vsyncadd [#allocation3], 0
      %s21 = sshll.u32 %s0, 4
      %s22 = int_to_ptr.hbm [resolvable:$true] %s21
      %s23 = sshll.u32 [#allocation2], 4
      %s24 = int_to_ptr.vmem [resolvable:$true] %s23
      %29 = dma.hbm_to_vmem [thread:$0]  %s22, 512, %s24, [#allocation3], 256, 256, 16
    $region5: #{tpu_custom_call.1} parent=1 // pred_fallthru
      _
    // Predicated region
    $region6: #{tpu_custom_call.1} parent=1 // pred_check
      _
    $region7: #{tpu_custom_call.1} parent=1 // pred_check_branch
      %31 = sbr.rel (0) target = $region9
    $region8: #{tpu_custom_call.1} parent=1 // pred_region
      %33 = vsyncadd [#allocation6], 0
      %s35 = sshll.u32 %s1, 4
      %s36 = int_to_ptr.hbm [resolvable:$true] %s35
      %s37 = sshll.u32 [#allocation5], 4
      %s38 = int_to_ptr.vmem [resolvable:$true] %s37
      %40 = dma.hbm_to_vmem [thread:$0]  %s36, 32, %s38, [#allocation6]
    $region9: #{tpu_custom_call.1} parent=1 // pred_fallthru
      _
    // Predicated region
    $region10: #{tpu_custom_call.1} parent=1 // pred_check
      _
    $region11: #{tpu_custom_call.1} parent=1 // pred_check_branch
      %42 = sbr.rel (0) target = $region13
    $region12: #{tpu_custom_call.1} parent=1 // pred_region
      %44 = vsyncadd [#allocation6], 0
      %s46 = sshll.u32 %s2, 4
      %s47 = int_to_ptr.hbm [resolvable:$true] %s46
      %s48 = sshll.u32 [#allocation7], 4
      %s49 = int_to_ptr.vmem [resolvable:$true] %s48
      %51 = dma.hbm_to_vmem [thread:$0]  %s47, 32, %s49, [#allocation6]
    $region13: #{tpu_custom_call.1} parent=1 // pred_fallthru
      _
    // Predicated region
    $region14: #{tpu_custom_call.1} parent=1 // pred_check
      _
    $region15: #{tpu_custom_call.1} parent=1 // pred_check_branch
      %53 = sbr.rel (0) target = $region17
    $region16: #{tpu_custom_call.1} parent=1 // pred_region
      %55 = vsyncadd [#allocation9], 0
      %s56 = sshll.u32 %s3, 4
      %s57 = int_to_ptr.hbm [resolvable:$true] %s56
      %s58 = sshll.u32 [#allocation8], 4
      %s59 = int_to_ptr.vmem [resolvable:$true] %s58
      %64 = dma.hbm_to_vmem [thread:$0]  %s57, 8192, %s59, [#allocation9], 256, 256, 16
    $region17: #{tpu_custom_call.1} parent=1 // pred_fallthru
      _
    // Predicated region
    $region18: #{tpu_custom_call.1} parent=1 // pred_check
      _
    $region19: #{tpu_custom_call.1} parent=1 // pred_check_branch
      %66 = sbr.rel (0) target = $region21
    $region20: #{tpu_custom_call.1} parent=1 // pred_region
      %68 = vsyncadd [#allocation9], 0
      %s70 = sshll.u32 %s4, 4
      %s71 = int_to_ptr.hbm [resolvable:$true] %s70
      %s72 = sshll.u32 [#allocation10], 4
      %s73 = int_to_ptr.vmem [resolvable:$true] %s72
      %75 = dma.hbm_to_vmem [thread:$0]  %s71, 64, %s73, [#allocation9]
    $region21: #{tpu_custom_call.1} parent=1 // pred_fallthru
      _
    // Predicated region
    $region22: #{tpu_custom_call.1} parent=1 // pred_check
      _
    $region23: #{tpu_custom_call.1} parent=1 // pred_check_branch
      %77 = sbr.rel (0) target = $region25
    $region24: #{tpu_custom_call.1} parent=1 // pred_region
      %79 = vsyncadd [#allocation12], 0
      %s80 = sshll.u32 %s5, 4
      %s81 = int_to_ptr.hbm [resolvable:$true] %s80
      %s82 = sshll.u32 [#allocation11], 4
      %s83 = int_to_ptr.vmem [resolvable:$true] %s82
      %88 = dma.hbm_to_vmem [thread:$0]  %s81, 8192, %s83, [#allocation12], 128, 128, 8
    $region25: #{tpu_custom_call.1} parent=1 // pred_fallthru
      _
    // Predicated region
    $region26: #{tpu_custom_call.1} parent=1 // pred_check
      _
    $region27: #{tpu_custom_call.1} parent=1 // pred_check_branch
      %90 = sbr.rel (0) target = $region29
    $region28: #{tpu_custom_call.1} parent=1 // pred_region
      _
    $region29: #{tpu_custom_call.1} parent=1 // pred_fallthru
      _
    // Predicated region
    $region30: #{tpu_custom_call.1} parent=1 // pred_check
      _
    $region31: #{tpu_custom_call.1} parent=1 // pred_check_branch
      %92 = sbr.rel (0) target = $region33
    $region32: #{tpu_custom_call.1} parent=1 // pred_region
      %94 = dma.done [#allocation3], 512
    $region33: #{tpu_custom_call.1} parent=1 // pred_fallthru
      _
    // Predicated region
    $region34: #{tpu_custom_call.1} parent=1 // pred_check
      _
    $region35: #{tpu_custom_call.1} parent=1 // pred_check_branch
      %96 = sbr.rel (0) target = $region37
    $region36: #{tpu_custom_call.1} parent=1 // pred_region
      %98 = dma.done [#allocation6], 32
    $region37: #{tpu_custom_call.1} parent=1 // pred_fallthru
      _
    // Predicated region
    $region38: #{tpu_custom_call.1} parent=1 // pred_check
      _
    $region39: #{tpu_custom_call.1} parent=1 // pred_check_branch
      %100 = sbr.rel (0) target = $region41
    $region40: #{tpu_custom_call.1} parent=1 // pred_region
      %102 = dma.done [#allocation6], 32
    $region41: #{tpu_custom_call.1} parent=1 // pred_fallthru
      _
    // Predicated region
    $region42: #{tpu_custom_call.1} parent=1 // pred_check
      _
    $region43: #{tpu_custom_call.1} parent=1 // pred_check_branch
      %104 = sbr.rel (0) target = $region45
    $region44: #{tpu_custom_call.1} parent=1 // pred_region
      %106 = dma.done [#allocation9], 8192
    $region45: #{tpu_custom_call.1} parent=1 // pred_fallthru
      _
    // Predicated region
    $region46: #{tpu_custom_call.1} parent=1 // pred_check
      _
    $region47: #{tpu_custom_call.1} parent=1 // pred_check_branch
      %108 = sbr.rel (0) target = $region49
    $region48: #{tpu_custom_call.1} parent=1 // pred_region
      %110 = dma.done [#allocation9], 64
    $region49: #{tpu_custom_call.1} parent=1 // pred_fallthru
      _
    // Predicated region
    $region50: #{tpu_custom_call.1} parent=1 // pred_check
      _
    $region51: #{tpu_custom_call.1} parent=1 // pred_check_branch
      %112 = sbr.rel (0) target = $region53
    $region52: #{tpu_custom_call.1} parent=1 // pred_region
      %114 = dma.done [#allocation12], 8192
    $region53: #{tpu_custom_call.1} parent=1 // pred_fallthru
      _
    %v115 = vld [vmem:[#allocation2] sm:$0xff]
    %v116 = vld [vmem:[#allocation2 + $0x8] sm:$0xff]
    %v117 = vld [vmem:[#allocation2 + $0x10] sm:$0xff]
    %v118 = vld [vmem:[#allocation2 + $0x18] sm:$0xff]
    %v119 = vadd.f32 %v115, %v116
    %120 = vadd.xlane.f32.xlu0 %v119
    %v121 = vpop.xlane.xlu0 %120
    %v122 = vadd.f32 %v117, %v118
    %123 = vadd.xlane.f32.xlu0 %v122
    %v124 = vpop.xlane.xlu0 %123
    %v125 = vrcp.pop 256.0
    %v126 = vmul.f32 256.0, %v125
    %v127 = vsub.f32 1.0, %v126
    %v128 = vmul.f32 %v125, %v127
    %v129 = vadd.f32 %v125, %v128
    %vm130 = vweird.f32 %v125
    %v131 = vsel %vm130, %v125, %v129
    %v132 = vmul.f32 %v121, %v131
    %v133 = vmul.f32 %v124, %v131
    %v134 = vsub.f32 %v115, %v132
    %v135 = vsub.f32 %v116, %v132
    %v136 = vsub.f32 %v117, %v133
    %v137 = vsub.f32 %v118, %v133
    %v138 = vmul.f32 %v134, %v134
    %v139 = vmul.f32 %v135, %v135
    %v140 = vmul.f32 %v136, %v136
    %v141 = vmul.f32 %v137, %v137
    %v142 = vadd.f32 %v138, %v139
    %143 = vadd.xlane.f32.xlu0 %v142
    %v144 = vpop.xlane.xlu0 %143
    %v145 = vadd.f32 %v140, %v141
    %146 = vadd.xlane.f32.xlu0 %v145
    %v147 = vpop.xlane.xlu0 %146
    %v148 = vmul.f32 %v144, %v131
    %v149 = vmul.f32 %v147, %v131
    %v150 = vadd.f32 %v148, 1e-05
    %v151 = vadd.f32 %v149, 1e-05
    %v152 = vrsqrt.pop %v150
    %v153 = vmul.f32 %v152, %v150
    %v154 = vmul.f32 %v153, %v152
    %v155 = vmul.f32 0.5, %v154
    %v156 = vsub.f32 1.5, %v155
    %v157 = vmul.f32 %v152, %v156
    %vm158 = vweird.f32 %v150
    %vm159 = vweird.f32 %v152
    %vm160 = vmor %vm158, %vm159
    %v161 = vsel %vm160, %v152, %v157
    %v162 = vrsqrt.pop %v151
    %v163 = vmul.f32 %v162, %v151
    %v164 = vmul.f32 %v163, %v162
    %v165 = vmul.f32 0.5, %v164
    %v166 = vsub.f32 1.5, %v165
    %v167 = vmul.f32 %v162, %v166
    %vm168 = vweird.f32 %v151
    %vm169 = vweird.f32 %v162
    %vm170 = vmor %vm168, %vm169
    %v171 = vsel %vm170, %v162, %v167
    %v172 = vmul.f32 %v134, %v161
    %v173 = vmul.f32 %v135, %v161
    %v174 = vmul.f32 %v136, %v171
    %v175 = vmul.f32 %v137, %v171
    %v176 = vld [vmem:[#allocation5] sm:$0x3]
    %v178 = vperm.slane %v176, 0
    %v179 = vperm.slane %v176, 1
    %v182 = vmul.f32 %v172, %v178
    %v183 = vmul.f32 %v173, %v179
    %v184 = vmul.f32 %v174, %v178
    %v185 = vmul.f32 %v175, %v179
    %v186 = vld [vmem:[#allocation7] sm:$0x3]
    %v188 = vperm.slane %v186, 0
    %v189 = vperm.slane %v186, 1
    %v192 = vadd.f32 %v182, %v188
    %v193 = vadd.f32 %v183, %v189
    %v194 = vadd.f32 %v184, %v188
    %v195 = vadd.f32 %v185, %v189
    %v196 = vpack.c.bf16 %v194, %v192
    %v197 = vpack.c.bf16 %v195, %v193
    %v198 = vld [vmem:[#allocation8] sm:$0xff]
    %v199 = vld [vmem:[#allocation8 + $0x8] sm:$0xff]
    %v200 = vld [vmem:[#allocation8 + $0x10] sm:$0xff]
    %v201 = vld [vmem:[#allocation8 + $0x18] sm:$0xff]
    %v202 = vld [vmem:[#allocation8 + $0x20] sm:$0xff]
    %v203 = vld [vmem:[#allocation8 + $0x28] sm:$0xff]
    %v204 = vld [vmem:[#allocation8 + $0x30] sm:$0xff]
    %v205 = vld [vmem:[#allocation8 + $0x38] sm:$0xff]
    %v206 = vld [vmem:[#allocation8 + $0x40] sm:$0xff]
    %v207 = vld [vmem:[#allocation8 + $0x48] sm:$0xff]
    %v208 = vld [vmem:[#allocation8 + $0x50] sm:$0xff]
    %v209 = vld [vmem:[#allocation8 + $0x58] sm:$0xff]
    %v210 = vld [vmem:[#allocation8 + $0x60] sm:$0xff]
    %v211 = vld [vmem:[#allocation8 + $0x68] sm:$0xff]
    %v212 = vld [vmem:[#allocation8 + $0x70] sm:$0xff]
    %v213 = vld [vmem:[#allocation8 + $0x78] sm:$0xff]
    %v214 = vld [vmem:[#allocation8 + $0x80] sm:$0xff]
    %v215 = vld [vmem:[#allocation8 + $0x88] sm:$0xff]
    %v216 = vld [vmem:[#allocation8 + $0x90] sm:$0xff]
    %v217 = vld [vmem:[#allocation8 + $0x98] sm:$0xff]
    %v218 = vld [vmem:[#allocation8 + $0xa0] sm:$0xff]
    %v219 = vld [vmem:[#allocation8 + $0xa8] sm:$0xff]
    %v220 = vld [vmem:[#allocation8 + $0xb0] sm:$0xff]
    %v221 = vld [vmem:[#allocation8 + $0xb8] sm:$0xff]
    %v222 = vld [vmem:[#allocation8 + $0xc0] sm:$0xff]
    %v223 = vld [vmem:[#allocation8 + $0xc8] sm:$0xff]
    %v224 = vld [vmem:[#allocation8 + $0xd0] sm:$0xff]
    %v225 = vld [vmem:[#allocation8 + $0xd8] sm:$0xff]
    %v226 = vld [vmem:[#allocation8 + $0xe0] sm:$0xff]
    %v227 = vld [vmem:[#allocation8 + $0xe8] sm:$0xff]
    %v228 = vld [vmem:[#allocation8 + $0xf0] sm:$0xff]
    %v229 = vld [vmem:[#allocation8 + $0xf8] sm:$0xff]
    %v230 = vld [vmem:[#allocation8 + $0x100] sm:$0xff]
    %v231 = vld [vmem:[#allocation8 + $0x108] sm:$0xff]
    %v232 = vld [vmem:[#allocation8 + $0x110] sm:$0xff]
    %v233 = vld [vmem:[#allocation8 + $0x118] sm:$0xff]
    %v234 = vld [vmem:[#allocation8 + $0x120] sm:$0xff]
    %v235 = vld [vmem:[#allocation8 + $0x128] sm:$0xff]
    %v236 = vld [vmem:[#allocation8 + $0x130] sm:$0xff]
    %v237 = vld [vmem:[#allocation8 + $0x138] sm:$0xff]
    %v238 = vld [vmem:[#allocation8 + $0x140] sm:$0xff]
    %v239 = vld [vmem:[#allocation8 + $0x148] sm:$0xff]
    %v240 = vld [vmem:[#allocation8 + $0x150] sm:$0xff]
    %v241 = vld [vmem:[#allocation8 + $0x158] sm:$0xff]
    %v242 = vld [vmem:[#allocation8 + $0x160] sm:$0xff]
    %v243 = vld [vmem:[#allocation8 + $0x168] sm:$0xff]
    %v244 = vld [vmem:[#allocation8 + $0x170] sm:$0xff]
    %v245 = vld [vmem:[#allocation8 + $0x178] sm:$0xff]
    %v246 = vld [vmem:[#allocation8 + $0x180] sm:$0xff]
    %v247 = vld [vmem:[#allocation8 + $0x188] sm:$0xff]
    %v248 = vld [vmem:[#allocation8 + $0x190] sm:$0xff]
    %v249 = vld [vmem:[#allocation8 + $0x198] sm:$0xff]
    %v250 = vld [vmem:[#allocation8 + $0x1a0] sm:$0xff]
    %v251 = vld [vmem:[#allocation8 + $0x1a8] sm:$0xff]
    %v252 = vld [vmem:[#allocation8 + $0x1b0] sm:$0xff]
    %v253 = vld [vmem:[#allocation8 + $0x1b8] sm:$0xff]
    %v254 = vld [vmem:[#allocation8 + $0x1c0] sm:$0xff]
    %v255 = vld [vmem:[#allocation8 + $0x1c8] sm:$0xff]
    %v256 = vld [vmem:[#allocation8 + $0x1d0] sm:$0xff]
    %v257 = vld [vmem:[#allocation8 + $0x1d8] sm:$0xff]
    %v258 = vld [vmem:[#allocation8 + $0x1e0] sm:$0xff]
    %v259 = vld [vmem:[#allocation8 + $0x1e8] sm:$0xff]
    %v260 = vld [vmem:[#allocation8 + $0x1f0] sm:$0xff]
    %v261 = vld [vmem:[#allocation8 + $0x1f8] sm:$0xff]
    %v262 = vld [vmem:[#allocation10] sm:$0xf]
    %v264 = vperm.slane %v262, 0
    %v265 = vperm.slane %v262, 1
    %v266 = vperm.slane %v262, 2
    %v267 = vperm.slane %v262, 3
    %v336 = vunpack.c.l.b16 %v198
    %v337 = vunpack.c.h.b16 %v198
    %v338 = vunpack.c.l.b16 %v199
    %v339 = vunpack.c.h.b16 %v199
    %v340 = vunpack.c.l.b16 %v200
    %v341 = vunpack.c.h.b16 %v200
    %v342 = vunpack.c.l.b16 %v201
    %v343 = vunpack.c.h.b16 %v201
    %v344 = vunpack.c.l.b16 %v202
    %v345 = vunpack.c.h.b16 %v202
    %v346 = vunpack.c.l.b16 %v203
    %v347 = vunpack.c.h.b16 %v203
    %v348 = vunpack.c.l.b16 %v204
    %v349 = vunpack.c.h.b16 %v204
    %v350 = vunpack.c.l.b16 %v205
    %v351 = vunpack.c.h.b16 %v205
    %v352 = vunpack.c.l.b16 %v206
    %v353 = vunpack.c.h.b16 %v206
    %v354 = vunpack.c.l.b16 %v207
    %v355 = vunpack.c.h.b16 %v207
    %v356 = vunpack.c.l.b16 %v208
    %v357 = vunpack.c.h.b16 %v208
    %v358 = vunpack.c.l.b16 %v209
    %v359 = vunpack.c.h.b16 %v209
    %v360 = vunpack.c.l.b16 %v210
    %v361 = vunpack.c.h.b16 %v210
    %v362 = vunpack.c.l.b16 %v211
    %v363 = vunpack.c.h.b16 %v211
    %v364 = vunpack.c.l.b16 %v212
    %v365 = vunpack.c.h.b16 %v212
    %v366 = vunpack.c.l.b16 %v213
    %v367 = vunpack.c.h.b16 %v213
    %v368 = vunpack.c.l.b16 %v214
    %v369 = vunpack.c.h.b16 %v214
    %v370 = vunpack.c.l.b16 %v215
    %v371 = vunpack.c.h.b16 %v215
    %v372 = vunpack.c.l.b16 %v216
    %v373 = vunpack.c.h.b16 %v216
    %v374 = vunpack.c.l.b16 %v217
    %v375 = vunpack.c.h.b16 %v217
    %v376 = vunpack.c.l.b16 %v218
    %v377 = vunpack.c.h.b16 %v218
    %v378 = vunpack.c.l.b16 %v219
    %v379 = vunpack.c.h.b16 %v219
    %v380 = vunpack.c.l.b16 %v220
    %v381 = vunpack.c.h.b16 %v220
    %v382 = vunpack.c.l.b16 %v221
    %v383 = vunpack.c.h.b16 %v221
    %v384 = vunpack.c.l.b16 %v222
    %v385 = vunpack.c.h.b16 %v222
    %v386 = vunpack.c.l.b16 %v223
    %v387 = vunpack.c.h.b16 %v223
    %v388 = vunpack.c.l.b16 %v224
    %v389 = vunpack.c.h.b16 %v224
    %v390 = vunpack.c.l.b16 %v225
    %v391 = vunpack.c.h.b16 %v225
    %v392 = vunpack.c.l.b16 %v226
    %v393 = vunpack.c.h.b16 %v226
    %v394 = vunpack.c.l.b16 %v227
    %v395 = vunpack.c.h.b16 %v227
    %v396 = vunpack.c.l.b16 %v228
    %v397 = vunpack.c.h.b16 %v228
    %v398 = vunpack.c.l.b16 %v229
    %v399 = vunpack.c.h.b16 %v229
    %v400 = vunpack.c.l.b16 %v230
    %v401 = vunpack.c.h.b16 %v230
    %v402 = vunpack.c.l.b16 %v231
    %v403 = vunpack.c.h.b16 %v231
    %v404 = vunpack.c.l.b16 %v232
    %v405 = vunpack.c.h.b16 %v232
    %v406 = vunpack.c.l.b16 %v233
    %v407 = vunpack.c.h.b16 %v233
    %v408 = vunpack.c.l.b16 %v234
    %v409 = vunpack.c.h.b16 %v234
    %v410 = vunpack.c.l.b16 %v235
    %v411 = vunpack.c.h.b16 %v235
    %v412 = vunpack.c.l.b16 %v236
    %v413 = vunpack.c.h.b16 %v236
    %v414 = vunpack.c.l.b16 %v237
    %v415 = vunpack.c.h.b16 %v237
    %v416 = vunpack.c.l.b16 %v238
    %v417 = vunpack.c.h.b16 %v238
    %v418 = vunpack.c.l.b16 %v239
    %v419 = vunpack.c.h.b16 %v239
    %v420 = vunpack.c.l.b16 %v240
    %v421 = vunpack.c.h.b16 %v240
    %v422 = vunpack.c.l.b16 %v241
    %v423 = vunpack.c.h.b16 %v241
    %v424 = vunpack.c.l.b16 %v242
    %v425 = vunpack.c.h.b16 %v242
    %v426 = vunpack.c.l.b16 %v243
    %v427 = vunpack.c.h.b16 %v243
    %v428 = vunpack.c.l.b16 %v244
    %v429 = vunpack.c.h.b16 %v244
    %v430 = vunpack.c.l.b16 %v245
    %v431 = vunpack.c.h.b16 %v245
    %v432 = vunpack.c.l.b16 %v246
    %v433 = vunpack.c.h.b16 %v246
    %v434 = vunpack.c.l.b16 %v247
    %v435 = vunpack.c.h.b16 %v247
    %v436 = vunpack.c.l.b16 %v248
    %v437 = vunpack.c.h.b16 %v248
    %v438 = vunpack.c.l.b16 %v249
    %v439 = vunpack.c.h.b16 %v249
    %v440 = vunpack.c.l.b16 %v250
    %v441 = vunpack.c.h.b16 %v250
    %v442 = vunpack.c.l.b16 %v251
    %v443 = vunpack.c.h.b16 %v251
    %v444 = vunpack.c.l.b16 %v252
    %v445 = vunpack.c.h.b16 %v252
    %v446 = vunpack.c.l.b16 %v253
    %v447 = vunpack.c.h.b16 %v253
    %v448 = vunpack.c.l.b16 %v254
    %v449 = vunpack.c.h.b16 %v254
    %v450 = vunpack.c.l.b16 %v255
    %v451 = vunpack.c.h.b16 %v255
    %v452 = vunpack.c.l.b16 %v256
    %v453 = vunpack.c.h.b16 %v256
    %v454 = vunpack.c.l.b16 %v257
    %v455 = vunpack.c.h.b16 %v257
    %v456 = vunpack.c.l.b16 %v258
    %v457 = vunpack.c.h.b16 %v258
    %v458 = vunpack.c.l.b16 %v259
    %v459 = vunpack.c.h.b16 %v259
    %v460 = vunpack.c.l.b16 %v260
    %v461 = vunpack.c.h.b16 %v260
    %v462 = vunpack.c.l.b16 %v261
    %v463 = vunpack.c.h.b16 %v261
    %v464 = vpack.c.b16 %v340, %v336
    %v465 = vpack.c.b16 %v341, %v337
    %v466 = vpack.c.b16 %v342, %v338
    %v467 = vpack.c.b16 %v343, %v339
    %v468 = vpack.c.b16 %v348, %v344
    %v469 = vpack.c.b16 %v349, %v345
    %v470 = vpack.c.b16 %v350, %v346
    %v471 = vpack.c.b16 %v351, %v347
    %v472 = vpack.c.b16 %v356, %v352
    %v473 = vpack.c.b16 %v357, %v353
    %v474 = vpack.c.b16 %v358, %v354
    %v475 = vpack.c.b16 %v359, %v355
    %v476 = vpack.c.b16 %v364, %v360
    %v477 = vpack.c.b16 %v365, %v361
    %v478 = vpack.c.b16 %v366, %v362
    %v479 = vpack.c.b16 %v367, %v363
    %v480 = vpack.c.b16 %v372, %v368
    %v481 = vpack.c.b16 %v373, %v369
    %v482 = vpack.c.b16 %v374, %v370
    %v483 = vpack.c.b16 %v375, %v371
    %v484 = vpack.c.b16 %v380, %v376
    %v485 = vpack.c.b16 %v381, %v377
    %v486 = vpack.c.b16 %v382, %v378
    %v487 = vpack.c.b16 %v383, %v379
    %v488 = vpack.c.b16 %v388, %v384
    %v489 = vpack.c.b16 %v389, %v385
    %v490 = vpack.c.b16 %v390, %v386
    %v491 = vpack.c.b16 %v391, %v387
    %v492 = vpack.c.b16 %v396, %v392
    %v493 = vpack.c.b16 %v397, %v393
    %v494 = vpack.c.b16 %v398, %v394
    %v495 = vpack.c.b16 %v399, %v395
    %v496 = vpack.c.b16 %v404, %v400
    %v497 = vpack.c.b16 %v405, %v401
    %v498 = vpack.c.b16 %v406, %v402
    %v499 = vpack.c.b16 %v407, %v403
    %v500 = vpack.c.b16 %v412, %v408
    %v501 = vpack.c.b16 %v413, %v409
    %v502 = vpack.c.b16 %v414, %v410
    %v503 = vpack.c.b16 %v415, %v411
    %v504 = vpack.c.b16 %v420, %v416
    %v505 = vpack.c.b16 %v421, %v417
    %v506 = vpack.c.b16 %v422, %v418
    %v507 = vpack.c.b16 %v423, %v419
    %v508 = vpack.c.b16 %v428, %v424
    %v509 = vpack.c.b16 %v429, %v425
    %v510 = vpack.c.b16 %v430, %v426
    %v511 = vpack.c.b16 %v431, %v427
    %v512 = vpack.c.b16 %v436, %v432
    %v513 = vpack.c.b16 %v437, %v433
    %v514 = vpack.c.b16 %v438, %v434
    %v515 = vpack.c.b16 %v439, %v435
    %v516 = vpack.c.b16 %v444, %v440
    %v517 = vpack.c.b16 %v445, %v441
    %v518 = vpack.c.b16 %v446, %v442
    %v519 = vpack.c.b16 %v447, %v443
    %v520 = vpack.c.b16 %v452, %v448
    %v521 = vpack.c.b16 %v453, %v449
    %v522 = vpack.c.b16 %v454, %v450
    %v523 = vpack.c.b16 %v455, %v451
    %v524 = vpack.c.b16 %v460, %v456
    %v525 = vpack.c.b16 %v461, %v457
    %v526 = vpack.c.b16 %v462, %v458
    %v527 = vpack.c.b16 %v463, %v459
    %592 = vmatpush.bf16.msra.mxu0 %v492
    %593 = vmatpush.bf16.msra.mxu0 %v488
    %594 = vmatpush.bf16.msra.mxu0 %v484
    %595 = vmatpush.bf16.msra.mxu0 %v480
    %596 = vmatpush.bf16.msra.mxu0 %v476
    %597 = vmatpush.bf16.msra.mxu0 %v472
    %598 = vmatpush.bf16.msra.mxu0 %v468
    %599 = vmatpush.bf16.msra.mxu0 %v464
    %600 = vmatmul.bf16.gmra.mxu0 %v196
    %v601 = vpop.f32.mrf.mxu0
    %v602 = vadd.f32 %v264, %v601
    %v603 = vpop.f32.mrf.mxu0
    %v604 = vadd.f32 %v264, %v603
    %605 = vdwg.mxu0
    %606 = vmatpush.bf16.msra.mxu0 %v524
    %607 = vmatpush.bf16.msra.mxu0 %v520
    %608 = vmatpush.bf16.msra.mxu0 %v516
    %609 = vmatpush.bf16.msra.mxu0 %v512
    %610 = vmatpush.bf16.msra.mxu0 %v508
    %611 = vmatpush.bf16.msra.mxu0 %v504
    %612 = vmatpush.bf16.msra.mxu0 %v500
    %613 = vmatpush.bf16.msra.mxu0 %v496
    %614 = vmatmul.bf16.gmra.mxu0 %v197
    %v615 = vpop.f32.mrf.mxu0
    %v616 = vadd.f32 %v602, %v615
    %v617 = vpop.f32.mrf.mxu0
    %v618 = vadd.f32 %v604, %v617
    %619 = vdwg.mxu0
    %620 = vmatpush.bf16.msra.mxu0 %v493
    %621 = vmatpush.bf16.msra.mxu0 %v489
    %622 = vmatpush.bf16.msra.mxu0 %v485
    %623 = vmatpush.bf16.msra.mxu0 %v481
    %624 = vmatpush.bf16.msra.mxu0 %v477
    %625 = vmatpush.bf16.msra.mxu0 %v473
    %626 = vmatpush.bf16.msra.mxu0 %v469
    %627 = vmatpush.bf16.msra.mxu0 %v465
    %628 = vmatmul.bf16.gmra.mxu0 %v196
    %v629 = vpop.f32.mrf.mxu0
    %v630 = vadd.f32 %v265, %v629
    %v631 = vpop.f32.mrf.mxu0
    %v632 = vadd.f32 %v265, %v631
    %633 = vdwg.mxu0
    %634 = vmatpush.bf16.msra.mxu0 %v525
    %635 = vmatpush.bf16.msra.mxu0 %v521
    %636 = vmatpush.bf16.msra.mxu0 %v517
    %637 = vmatpush.bf16.msra.mxu0 %v513
    %638 = vmatpush.bf16.msra.mxu0 %v509
    %639 = vmatpush.bf16.msra.mxu0 %v505
    %640 = vmatpush.bf16.msra.mxu0 %v501
    %641 = vmatpush.bf16.msra.mxu0 %v497
    %642 = vmatmul.bf16.gmra.mxu0 %v197
    %v643 = vpop.f32.mrf.mxu0
    %v644 = vadd.f32 %v630, %v643
    %v645 = vpop.f32.mrf.mxu0
    %v646 = vadd.f32 %v632, %v645
    %647 = vdwg.mxu0
    %648 = vmatpush.bf16.msra.mxu0 %v494
    %649 = vmatpush.bf16.msra.mxu0 %v490
    %650 = vmatpush.bf16.msra.mxu0 %v486
    %651 = vmatpush.bf16.msra.mxu0 %v482
    %652 = vmatpush.bf16.msra.mxu0 %v478
    %653 = vmatpush.bf16.msra.mxu0 %v474
    %654 = vmatpush.bf16.msra.mxu0 %v470
    %655 = vmatpush.bf16.msra.mxu0 %v466
    %656 = vmatmul.bf16.gmra.mxu0 %v196
    %v657 = vpop.f32.mrf.mxu0
    %v658 = vadd.f32 %v266, %v657
    %v659 = vpop.f32.mrf.mxu0
    %v660 = vadd.f32 %v266, %v659
    %661 = vdwg.mxu0
    %662 = vmatpush.bf16.msra.mxu0 %v526
    %663 = vmatpush.bf16.msra.mxu0 %v522
    %664 = vmatpush.bf16.msra.mxu0 %v518
    %665 = vmatpush.bf16.msra.mxu0 %v514
    %666 = vmatpush.bf16.msra.mxu0 %v510
    %667 = vmatpush.bf16.msra.mxu0 %v506
    %668 = vmatpush.bf16.msra.mxu0 %v502
    %669 = vmatpush.bf16.msra.mxu0 %v498
    %670 = vmatmul.bf16.gmra.mxu0 %v197
    %v671 = vpop.f32.mrf.mxu0
    %v672 = vadd.f32 %v658, %v671
    %v673 = vpop.f32.mrf.mxu0
    %v674 = vadd.f32 %v660, %v673
    %675 = vdwg.mxu0
    %676 = vmatpush.bf16.msra.mxu0 %v495
    %677 = vmatpush.bf16.msra.mxu0 %v491
    %678 = vmatpush.bf16.msra.mxu0 %v487
    %679 = vmatpush.bf16.msra.mxu0 %v483
    %680 = vmatpush.bf16.msra.mxu0 %v479
    %681 = vmatpush.bf16.msra.mxu0 %v475
    %682 = vmatpush.bf16.msra.mxu0 %v471
    %683 = vmatpush.bf16.msra.mxu0 %v467
    %684 = vmatmul.bf16.gmra.mxu0 %v196
    %v685 = vpop.f32.mrf.mxu0
    %v686 = vadd.f32 %v267, %v685
    %v687 = vpop.f32.mrf.mxu0
    %v688 = vadd.f32 %v267, %v687
    %689 = vdwg.mxu0
    %690 = vmatpush.bf16.msra.mxu0 %v527
    %691 = vmatpush.bf16.msra.mxu0 %v523
    %692 = vmatpush.bf16.msra.mxu0 %v519
    %693 = vmatpush.bf16.msra.mxu0 %v515
    %694 = vmatpush.bf16.msra.mxu0 %v511
    %695 = vmatpush.bf16.msra.mxu0 %v507
    %696 = vmatpush.bf16.msra.mxu0 %v503
    %697 = vmatpush.bf16.msra.mxu0 %v499
    %698 = vmatmul.bf16.gmra.mxu0 %v197
    %v699 = vpop.f32.mrf.mxu0
    %v700 = vadd.f32 %v686, %v699
    %v701 = vpop.f32.mrf.mxu0
    %v702 = vadd.f32 %v688, %v701
    %703 = vdwg.mxu0
    %v704 = vmul.f32 %v616, 0.5
    %v705 = vmul.f32 %v644, 0.5
    %v706 = vmul.f32 %v672, 0.5
    %v707 = vmul.f32 %v700, 0.5
    %v708 = vmul.f32 %v618, 0.5
    %v709 = vmul.f32 %v646, 0.5
    %v710 = vmul.f32 %v674, 0.5
    %v711 = vmul.f32 %v702, 0.5
    %v712 = vmul.f32 %v616, 0.70710677
    %v713 = vmul.f32 %v644, 0.70710677
    %v714 = vmul.f32 %v672, 0.70710677
    %v715 = vmul.f32 %v700, 0.70710677
    %v716 = vmul.f32 %v618, 0.70710677
    %v717 = vmul.f32 %v646, 0.70710677
    %v718 = vmul.f32 %v674, 0.70710677
    %v719 = vmul.f32 %v702, 0.70710677
    %v720 = vand.u32 2147483647, %v712
    %v721 = vand.u32 2147483647, %v713
    %v722 = vand.u32 2147483647, %v714
    %v723 = vand.u32 2147483647, %v715
    %v724 = vand.u32 2147483647, %v716
    %v725 = vand.u32 2147483647, %v717
    %v726 = vand.u32 2147483647, %v718
    %v727 = vand.u32 2147483647, %v719
    %v728 = vmul.f32 %v720, 0.3275911
    %v729 = vmul.f32 %v721, 0.3275911
    %v730 = vmul.f32 %v722, 0.3275911
    %v731 = vmul.f32 %v723, 0.3275911
    %v732 = vmul.f32 %v724, 0.3275911
    %v733 = vmul.f32 %v725, 0.3275911
    %v734 = vmul.f32 %v726, 0.3275911
    %v735 = vmul.f32 %v727, 0.3275911
    %v736 = vadd.f32 %v728, 1.0
    %v737 = vadd.f32 %v729, 1.0
    %v738 = vadd.f32 %v730, 1.0
    %v739 = vadd.f32 %v731, 1.0
    %v740 = vadd.f32 %v732, 1.0
    %v741 = vadd.f32 %v733, 1.0
    %v742 = vadd.f32 %v734, 1.0
    %v743 = vadd.f32 %v735, 1.0
    %v744 = vrcp.pop %v736
    %v745 = vrcp.pop %v737
    %v746 = vrcp.pop %v738
    %v747 = vrcp.pop %v739
    %v748 = vrcp.pop %v740
    %v749 = vrcp.pop %v741
    %v750 = vrcp.pop %v742
    %v751 = vrcp.pop %v743
    %v752 = vmul.f32 %v744, 1.0614054
    %v753 = vmul.f32 %v745, 1.0614054
    %v754 = vmul.f32 %v746, 1.0614054
    %v755 = vmul.f32 %v747, 1.0614054
    %v756 = vmul.f32 %v748, 1.0614054
    %v757 = vmul.f32 %v749, 1.0614054
    %v758 = vmul.f32 %v750, 1.0614054
    %v759 = vmul.f32 %v751, 1.0614054
    %v760 = vadd.f32 %v752, -1.4531521
    %v761 = vadd.f32 %v753, -1.4531521
    %v762 = vadd.f32 %v754, -1.4531521
    %v763 = vadd.f32 %v755, -1.4531521
    %v764 = vadd.f32 %v756, -1.4531521
    %v765 = vadd.f32 %v757, -1.4531521
    %v766 = vadd.f32 %v758, -1.4531521
    %v767 = vadd.f32 %v759, -1.4531521
    %v768 = vmul.f32 %v760, %v744
    %v769 = vmul.f32 %v761, %v745
    %v770 = vmul.f32 %v762, %v746
    %v771 = vmul.f32 %v763, %v747
    %v772 = vmul.f32 %v764, %v748
    %v773 = vmul.f32 %v765, %v749
    %v774 = vmul.f32 %v766, %v750
    %v775 = vmul.f32 %v767, %v751
    %v776 = vadd.f32 %v768, 1.4214138
    %v777 = vadd.f32 %v769, 1.4214138
    %v778 = vadd.f32 %v770, 1.4214138
    %v779 = vadd.f32 %v771, 1.4214138
    %v780 = vadd.f32 %v772, 1.4214138
    %v781 = vadd.f32 %v773, 1.4214138
    %v782 = vadd.f32 %v774, 1.4214138
    %v783 = vadd.f32 %v775, 1.4214138
    %v784 = vmul.f32 %v776, %v744
    %v785 = vmul.f32 %v777, %v745
    %v786 = vmul.f32 %v778, %v746
    %v787 = vmul.f32 %v779, %v747
    %v788 = vmul.f32 %v780, %v748
    %v789 = vmul.f32 %v781, %v749
    %v790 = vmul.f32 %v782, %v750
    %v791 = vmul.f32 %v783, %v751
    %v792 = vadd.f32 %v784, -0.28449672
    %v793 = vadd.f32 %v785, -0.28449672
    %v794 = vadd.f32 %v786, -0.28449672
    %v795 = vadd.f32 %v787, -0.28449672
    %v796 = vadd.f32 %v788, -0.28449672
    %v797 = vadd.f32 %v789, -0.28449672
    %v798 = vadd.f32 %v790, -0.28449672
    %v799 = vadd.f32 %v791, -0.28449672
    %v800 = vmul.f32 %v792, %v744
    %v801 = vmul.f32 %v793, %v745
    %v802 = vmul.f32 %v794, %v746
    %v803 = vmul.f32 %v795, %v747
    %v804 = vmul.f32 %v796, %v748
    %v805 = vmul.f32 %v797, %v749
    %v806 = vmul.f32 %v798, %v750
    %v807 = vmul.f32 %v799, %v751
    %v808 = vadd.f32 %v800, 0.2548296
    %v809 = vadd.f32 %v801, 0.2548296
    %v810 = vadd.f32 %v802, 0.2548296
    %v811 = vadd.f32 %v803, 0.2548296
    %v812 = vadd.f32 %v804, 0.2548296
    %v813 = vadd.f32 %v805, 0.2548296
    %v814 = vadd.f32 %v806, 0.2548296
    %v815 = vadd.f32 %v807, 0.2548296
    %v816 = vmul.f32 %v808, %v744
    %v817 = vmul.f32 %v809, %v745
    %v818 = vmul.f32 %v810, %v746
    %v819 = vmul.f32 %v811, %v747
    %v820 = vmul.f32 %v812, %v748
    %v821 = vmul.f32 %v813, %v749
    %v822 = vmul.f32 %v814, %v750
    %v823 = vmul.f32 %v815, %v751
    %v824 = vsub.f32 0.0, %v720
    %v825 = vsub.f32 0.0, %v721
    %v826 = vsub.f32 0.0, %v722
    %v827 = vsub.f32 0.0, %v723
    %v828 = vsub.f32 0.0, %v724
    %v829 = vsub.f32 0.0, %v725
    %v830 = vsub.f32 0.0, %v726
    %v831 = vsub.f32 0.0, %v727
    %v832 = vmul.f32 %v824, %v720
    %v833 = vmul.f32 %v825, %v721
    %v834 = vmul.f32 %v826, %v722
    %v835 = vmul.f32 %v827, %v723
    %v836 = vmul.f32 %v828, %v724
    %v837 = vmul.f32 %v829, %v725
    %v838 = vmul.f32 %v830, %v726
    %v839 = vmul.f32 %v831, %v727
    %v840 = vmul.f32 %v832, 1.442695
    %v841 = vpow.pop %v840
    %v842 = vmul.f32 %v833, 1.442695
    %v843 = vpow.pop %v842
    %v844 = vmul.f32 %v834, 1.442695
    %v845 = vpow.pop %v844
    %v846 = vmul.f32 %v835, 1.442695
    %v847 = vpow.pop %v846
    %v848 = vmul.f32 %v836, 1.442695
    %v849 = vpow.pop %v848
    %v850 = vmul.f32 %v837, 1.442695
    %v851 = vpow.pop %v850
    %v852 = vmul.f32 %v838, 1.442695
    %v853 = vpow.pop %v852
    %v854 = vmul.f32 %v839, 1.442695
    %v855 = vpow.pop %v854
    %v856 = vmul.f32 %v816, %v841
    %v857 = vmul.f32 %v817, %v843
    %v858 = vmul.f32 %v818, %v845
    %v859 = vmul.f32 %v819, %v847
    %v860 = vmul.f32 %v820, %v849
    %v861 = vmul.f32 %v821, %v851
    %v862 = vmul.f32 %v822, %v853
    %v863 = vmul.f32 %v823, %v855
    %v864 = vsub.f32 1.0, %v856
    %v865 = vsub.f32 1.0, %v857
    %v866 = vsub.f32 1.0, %v858
    %v867 = vsub.f32 1.0, %v859
    %v868 = vsub.f32 1.0, %v860
    %v869 = vsub.f32 1.0, %v861
    %v870 = vsub.f32 1.0, %v862
    %v871 = vsub.f32 1.0, %v863
    %vm872 = vcmp.ge.f32.partialorder %v712, 0.0
    %vm873 = vcmp.ge.f32.partialorder %v713, 0.0
    %vm874 = vcmp.ge.f32.partialorder %v714, 0.0
    %vm875 = vcmp.ge.f32.partialorder %v715, 0.0
    %vm876 = vcmp.ge.f32.partialorder %v716, 0.0
    %vm877 = vcmp.ge.f32.partialorder %v717, 0.0
    %vm878 = vcmp.ge.f32.partialorder %v718, 0.0
    %vm879 = vcmp.ge.f32.partialorder %v719, 0.0
    %v880 = vsub.f32 0.0, %v864
    %v881 = vsub.f32 0.0, %v865
    %v882 = vsub.f32 0.0, %v866
    %v883 = vsub.f32 0.0, %v867
    %v884 = vsub.f32 0.0, %v868
    %v885 = vsub.f32 0.0, %v869
    %v886 = vsub.f32 0.0, %v870
    %v887 = vsub.f32 0.0, %v871
    %v888 = vsel %vm872, %v864, %v880
    %v889 = vsel %vm873, %v865, %v881
    %v890 = vsel %vm874, %v866, %v882
    %v891 = vsel %vm875, %v867, %v883
    %v892 = vsel %vm876, %v868, %v884
    %v893 = vsel %vm877, %v869, %v885
    %v894 = vsel %vm878, %v870, %v886
    %v895 = vsel %vm879, %v871, %v887
    %v896 = vadd.f32 %v888, 1.0
    %v897 = vadd.f32 %v889, 1.0
    %v898 = vadd.f32 %v890, 1.0
    %v899 = vadd.f32 %v891, 1.0
    %v900 = vadd.f32 %v892, 1.0
    %v901 = vadd.f32 %v893, 1.0
    %v902 = vadd.f32 %v894, 1.0
    %v903 = vadd.f32 %v895, 1.0
    %v904 = vmul.f32 %v704, %v896
    %v905 = vmul.f32 %v705, %v897
    %v906 = vmul.f32 %v706, %v898
    %v907 = vmul.f32 %v707, %v899
    %v908 = vmul.f32 %v708, %v900
    %v909 = vmul.f32 %v709, %v901
    %v910 = vmul.f32 %v710, %v902
    %v911 = vmul.f32 %v711, %v903
    %v912 = vpack.c.bf16 %v908, %v904
    %v913 = vpack.c.bf16 %v909, %v905
    %v914 = vpack.c.bf16 %v910, %v906
    %v915 = vpack.c.bf16 %v911, %v907
    %v916 = vld [vmem:[#allocation11] sm:$0xff]
    %v917 = vld [vmem:[#allocation11 + $0x8] sm:$0xff]
    %v918 = vld [vmem:[#allocation11 + $0x10] sm:$0xff]
    %v919 = vld [vmem:[#allocation11 + $0x18] sm:$0xff]
    %v920 = vld [vmem:[#allocation11 + $0x20] sm:$0xff]
    %v921 = vld [vmem:[#allocation11 + $0x28] sm:$0xff]
    %v922 = vld [vmem:[#allocation11 + $0x30] sm:$0xff]
    %v923 = vld [vmem:[#allocation11 + $0x38] sm:$0xff]
    %v924 = vld [vmem:[#allocation11 + $0x40] sm:$0xff]
    %v925 = vld [vmem:[#allocation11 + $0x48] sm:$0xff]
    %v926 = vld [vmem:[#allocation11 + $0x50] sm:$0xff]
    %v927 = vld [vmem:[#allocation11 + $0x58] sm:$0xff]
    %v928 = vld [vmem:[#allocation11 + $0x60] sm:$0xff]
    %v929 = vld [vmem:[#allocation11 + $0x68] sm:$0xff]
    %v930 = vld [vmem:[#allocation11 + $0x70] sm:$0xff]
    %v931 = vld [vmem:[#allocation11 + $0x78] sm:$0xff]
    %v932 = vld [vmem:[#allocation11 + $0x80] sm:$0xff]
    %v933 = vld [vmem:[#allocation11 + $0x88] sm:$0xff]
    %v934 = vld [vmem:[#allocation11 + $0x90] sm:$0xff]
    %v935 = vld [vmem:[#allocation11 + $0x98] sm:$0xff]
    %v936 = vld [vmem:[#allocation11 + $0xa0] sm:$0xff]
    %v937 = vld [vmem:[#allocation11 + $0xa8] sm:$0xff]
    %v938 = vld [vmem:[#allocation11 + $0xb0] sm:$0xff]
    %v939 = vld [vmem:[#allocation11 + $0xb8] sm:$0xff]
    %v940 = vld [vmem:[#allocation11 + $0xc0] sm:$0xff]
    %v941 = vld [vmem:[#allocation11 + $0xc8] sm:$0xff]
    %v942 = vld [vmem:[#allocation11 + $0xd0] sm:$0xff]
    %v943 = vld [vmem:[#allocation11 + $0xd8] sm:$0xff]
    %v944 = vld [vmem:[#allocation11 + $0xe0] sm:$0xff]
    %v945 = vld [vmem:[#allocation11 + $0xe8] sm:$0xff]
    %v946 = vld [vmem:[#allocation11 + $0xf0] sm:$0xff]
    %v947 = vld [vmem:[#allocation11 + $0xf8] sm:$0xff]
    %v948 = vld [vmem:[#allocation11 + $0x100] sm:$0xff]
    %v949 = vld [vmem:[#allocation11 + $0x108] sm:$0xff]
    %v950 = vld [vmem:[#allocation11 + $0x110] sm:$0xff]
    %v951 = vld [vmem:[#allocation11 + $0x118] sm:$0xff]
    %v952 = vld [vmem:[#allocation11 + $0x120] sm:$0xff]
    %v953 = vld [vmem:[#allocation11 + $0x128] sm:$0xff]
    %v954 = vld [vmem:[#allocation11 + $0x130] sm:$0xff]
    %v955 = vld [vmem:[#allocation11 + $0x138] sm:$0xff]
    %v956 = vld [vmem:[#allocation11 + $0x140] sm:$0xff]
    %v957 = vld [vmem:[#allocation11 + $0x148] sm:$0xff]
    %v958 = vld [vmem:[#allocation11 + $0x150] sm:$0xff]
    %v959 = vld [vmem:[#allocation11 + $0x158] sm:$0xff]
    %v960 = vld [vmem:[#allocation11 + $0x160] sm:$0xff]
    %v961 = vld [vmem:[#allocation11 + $0x168] sm:$0xff]
    %v962 = vld [vmem:[#allocation11 + $0x170] sm:$0xff]
    %v963 = vld [vmem:[#allocation11 + $0x178] sm:$0xff]
    %v964 = vld [vmem:[#allocation11 + $0x180] sm:$0xff]
    %v965 = vld [vmem:[#allocation11 + $0x188] sm:$0xff]
    %v966 = vld [vmem:[#allocation11 + $0x190] sm:$0xff]
    %v967 = vld [vmem:[#allocation11 + $0x198] sm:$0xff]
    %v968 = vld [vmem:[#allocation11 + $0x1a0] sm:$0xff]
    %v969 = vld [vmem:[#allocation11 + $0x1a8] sm:$0xff]
    %v970 = vld [vmem:[#allocation11 + $0x1b0] sm:$0xff]
    %v971 = vld [vmem:[#allocation11 + $0x1b8] sm:$0xff]
    %v972 = vld [vmem:[#allocation11 + $0x1c0] sm:$0xff]
    %v973 = vld [vmem:[#allocation11 + $0x1c8] sm:$0xff]
    %v974 = vld [vmem:[#allocation11 + $0x1d0] sm:$0xff]
    %v975 = vld [vmem:[#allocation11 + $0x1d8] sm:$0xff]
    %v976 = vld [vmem:[#allocation11 + $0x1e0] sm:$0xff]
    %v977 = vld [vmem:[#allocation11 + $0x1e8] sm:$0xff]
    %v978 = vld [vmem:[#allocation11 + $0x1f0] sm:$0xff]
    %v979 = vld [vmem:[#allocation11 + $0x1f8] sm:$0xff]
    %v980 = vld [vmem:[%s6] sm:$0x3]
    %v982 = vperm.slane %v980, 0
    %v983 = vperm.slane %v980, 1
    %v1050 = vunpack.c.l.b16 %v916
    %v1051 = vunpack.c.h.b16 %v916
    %v1052 = vunpack.c.l.b16 %v917
    %v1053 = vunpack.c.h.b16 %v917
    %v1054 = vunpack.c.l.b16 %v918
    %v1055 = vunpack.c.h.b16 %v918
    %v1056 = vunpack.c.l.b16 %v919
    %v1057 = vunpack.c.h.b16 %v919
    %v1058 = vunpack.c.l.b16 %v920
    %v1059 = vunpack.c.h.b16 %v920
    %v1060 = vunpack.c.l.b16 %v921
    %v1061 = vunpack.c.h.b16 %v921
    %v1062 = vunpack.c.l.b16 %v922
    %v1063 = vunpack.c.h.b16 %v922
    %v1064 = vunpack.c.l.b16 %v923
    %v1065 = vunpack.c.h.b16 %v923
    %v1066 = vunpack.c.l.b16 %v924
    %v1067 = vunpack.c.h.b16 %v924
    %v1068 = vunpack.c.l.b16 %v925
    %v1069 = vunpack.c.h.b16 %v925
    %v1070 = vunpack.c.l.b16 %v926
    %v1071 = vunpack.c.h.b16 %v926
    %v1072 = vunpack.c.l.b16 %v927
    %v1073 = vunpack.c.h.b16 %v927
    %v1074 = vunpack.c.l.b16 %v928
    %v1075 = vunpack.c.h.b16 %v928
    %v1076 = vunpack.c.l.b16 %v929
    %v1077 = vunpack.c.h.b16 %v929
    %v1078 = vunpack.c.l.b16 %v930
    %v1079 = vunpack.c.h.b16 %v930
    %v1080 = vunpack.c.l.b16 %v931
    %v1081 = vunpack.c.h.b16 %v931
    %v1082 = vunpack.c.l.b16 %v932
    %v1083 = vunpack.c.h.b16 %v932
    %v1084 = vunpack.c.l.b16 %v933
    %v1085 = vunpack.c.h.b16 %v933
    %v1086 = vunpack.c.l.b16 %v934
    %v1087 = vunpack.c.h.b16 %v934
    %v1088 = vunpack.c.l.b16 %v935
    %v1089 = vunpack.c.h.b16 %v935
    %v1090 = vunpack.c.l.b16 %v936
    %v1091 = vunpack.c.h.b16 %v936
    %v1092 = vunpack.c.l.b16 %v937
    %v1093 = vunpack.c.h.b16 %v937
    %v1094 = vunpack.c.l.b16 %v938
    %v1095 = vunpack.c.h.b16 %v938
    %v1096 = vunpack.c.l.b16 %v939
    %v1097 = vunpack.c.h.b16 %v939
    %v1098 = vunpack.c.l.b16 %v940
    %v1099 = vunpack.c.h.b16 %v940
    %v1100 = vunpack.c.l.b16 %v941
    %v1101 = vunpack.c.h.b16 %v941
    %v1102 = vunpack.c.l.b16 %v942
    %v1103 = vunpack.c.h.b16 %v942
    %v1104 = vunpack.c.l.b16 %v943
    %v1105 = vunpack.c.h.b16 %v943
    %v1106 = vunpack.c.l.b16 %v944
    %v1107 = vunpack.c.h.b16 %v944
    %v1108 = vunpack.c.l.b16 %v945
    %v1109 = vunpack.c.h.b16 %v945
    %v1110 = vunpack.c.l.b16 %v946
    %v1111 = vunpack.c.h.b16 %v946
    %v1112 = vunpack.c.l.b16 %v947
    %v1113 = vunpack.c.h.b16 %v947
    %v1114 = vunpack.c.l.b16 %v948
    %v1115 = vunpack.c.h.b16 %v948
    %v1116 = vunpack.c.l.b16 %v949
    %v1117 = vunpack.c.h.b16 %v949
    %v1118 = vunpack.c.l.b16 %v950
    %v1119 = vunpack.c.h.b16 %v950
    %v1120 = vunpack.c.l.b16 %v951
    %v1121 = vunpack.c.h.b16 %v951
    %v1122 = vunpack.c.l.b16 %v952
    %v1123 = vunpack.c.h.b16 %v952
    %v1124 = vunpack.c.l.b16 %v953
    %v1125 = vunpack.c.h.b16 %v953
    %v1126 = vunpack.c.l.b16 %v954
    %v1127 = vunpack.c.h.b16 %v954
    %v1128 = vunpack.c.l.b16 %v955
    %v1129 = vunpack.c.h.b16 %v955
    %v1130 = vunpack.c.l.b16 %v956
    %v1131 = vunpack.c.h.b16 %v956
    %v1132 = vunpack.c.l.b16 %v957
    %v1133 = vunpack.c.h.b16 %v957
    %v1134 = vunpack.c.l.b16 %v958
    %v1135 = vunpack.c.h.b16 %v958
    %v1136 = vunpack.c.l.b16 %v959
    %v1137 = vunpack.c.h.b16 %v959
    %v1138 = vunpack.c.l.b16 %v960
    %v1139 = vunpack.c.h.b16 %v960
    %v1140 = vunpack.c.l.b16 %v961
    %v1141 = vunpack.c.h.b16 %v961
    %v1142 = vunpack.c.l.b16 %v962
    %v1143 = vunpack.c.h.b16 %v962
    %v1144 = vunpack.c.l.b16 %v963
    %v1145 = vunpack.c.h.b16 %v963
    %v1146 = vunpack.c.l.b16 %v964
    %v1147 = vunpack.c.h.b16 %v964
    %v1148 = vunpack.c.l.b16 %v965
    %v1149 = vunpack.c.h.b16 %v965
    %v1150 = vunpack.c.l.b16 %v966
    %v1151 = vunpack.c.h.b16 %v966
    %v1152 = vunpack.c.l.b16 %v967
    %v1153 = vunpack.c.h.b16 %v967
    %v1154 = vunpack.c.l.b16 %v968
    %v1155 = vunpack.c.h.b16 %v968
    %v1156 = vunpack.c.l.b16 %v969
    %v1157 = vunpack.c.h.b16 %v969
    %v1158 = vunpack.c.l.b16 %v970
    %v1159 = vunpack.c.h.b16 %v970
    %v1160 = vunpack.c.l.b16 %v971
    %v1161 = vunpack.c.h.b16 %v971
    %v1162 = vunpack.c.l.b16 %v972
    %v1163 = vunpack.c.h.b16 %v972
    %v1164 = vunpack.c.l.b16 %v973
    %v1165 = vunpack.c.h.b16 %v973
    %v1166 = vunpack.c.l.b16 %v974
    %v1167 = vunpack.c.h.b16 %v974
    %v1168 = vunpack.c.l.b16 %v975
    %v1169 = vunpack.c.h.b16 %v975
    %v1170 = vunpack.c.l.b16 %v976
    %v1171 = vunpack.c.h.b16 %v976
    %v1172 = vunpack.c.l.b16 %v977
    %v1173 = vunpack.c.h.b16 %v977
    %v1174 = vunpack.c.l.b16 %v978
    %v1175 = vunpack.c.h.b16 %v978
    %v1176 = vunpack.c.l.b16 %v979
    %v1177 = vunpack.c.h.b16 %v979
    %v1178 = vpack.c.b16 %v1052, %v1050
    %v1179 = vpack.c.b16 %v1053, %v1051
    %v1180 = vpack.c.b16 %v1056, %v1054
    %v1181 = vpack.c.b16 %v1057, %v1055
    %v1182 = vpack.c.b16 %v1060, %v1058
    %v1183 = vpack.c.b16 %v1061, %v1059
    %v1184 = vpack.c.b16 %v1064, %v1062
    %v1185 = vpack.c.b16 %v1065, %v1063
    %v1186 = vpack.c.b16 %v1068, %v1066
    %v1187 = vpack.c.b16 %v1069, %v1067
    %v1188 = vpack.c.b16 %v1072, %v1070
    %v1189 = vpack.c.b16 %v1073, %v1071
    %v1190 = vpack.c.b16 %v1076, %v1074
    %v1191 = vpack.c.b16 %v1077, %v1075
    %v1192 = vpack.c.b16 %v1080, %v1078
    %v1193 = vpack.c.b16 %v1081, %v1079
    %v1194 = vpack.c.b16 %v1084, %v1082
    %v1195 = vpack.c.b16 %v1085, %v1083
    %v1196 = vpack.c.b16 %v1088, %v1086
    %v1197 = vpack.c.b16 %v1089, %v1087
    %v1198 = vpack.c.b16 %v1092, %v1090
    %v1199 = vpack.c.b16 %v1093, %v1091
    %v1200 = vpack.c.b16 %v1096, %v1094
    %v1201 = vpack.c.b16 %v1097, %v1095
    %v1202 = vpack.c.b16 %v1100, %v1098
    %v1203 = vpack.c.b16 %v1101, %v1099
    %v1204 = vpack.c.b16 %v1104, %v1102
    %v1205 = vpack.c.b16 %v1105, %v1103
    %v1206 = vpack.c.b16 %v1108, %v1106
    %v1207 = vpack.c.b16 %v1109, %v1107
    %v1208 = vpack.c.b16 %v1112, %v1110
    %v1209 = vpack.c.b16 %v1113, %v1111
    %v1210 = vpack.c.b16 %v1116, %v1114
    %v1211 = vpack.c.b16 %v1117, %v1115
    %v1212 = vpack.c.b16 %v1120, %v1118
    %v1213 = vpack.c.b16 %v1121, %v1119
    %v1214 = vpack.c.b16 %v1124, %v1122
    %v1215 = vpack.c.b16 %v1125, %v1123
    %v1216 = vpack.c.b16 %v1128, %v1126
    %v1217 = vpack.c.b16 %v1129, %v1127
    %v1218 = vpack.c.b16 %v1132, %v1130
    %v1219 = vpack.c.b16 %v1133, %v1131
    %v1220 = vpack.c.b16 %v1136, %v1134
    %v1221 = vpack.c.b16 %v1137, %v1135
    %v1222 = vpack.c.b16 %v1140, %v1138
    %v1223 = vpack.c.b16 %v1141, %v1139
    %v1224 = vpack.c.b16 %v1144, %v1142
    %v1225 = vpack.c.b16 %v1145, %v1143
    %v1226 = vpack.c.b16 %v1148, %v1146
    %v1227 = vpack.c.b16 %v1149, %v1147
    %v1228 = vpack.c.b16 %v1152, %v1150
    %v1229 = vpack.c.b16 %v1153, %v1151
    %v1230 = vpack.c.b16 %v1156, %v1154
    %v1231 = vpack.c.b16 %v1157, %v1155
    %v1232 = vpack.c.b16 %v1160, %v1158
    %v1233 = vpack.c.b16 %v1161, %v1159
    %v1234 = vpack.c.b16 %v1164, %v1162
    %v1235 = vpack.c.b16 %v1165, %v1163
    %v1236 = vpack.c.b16 %v1168, %v1166
    %v1237 = vpack.c.b16 %v1169, %v1167
    %v1238 = vpack.c.b16 %v1172, %v1170
    %v1239 = vpack.c.b16 %v1173, %v1171
    %v1240 = vpack.c.b16 %v1176, %v1174
    %v1241 = vpack.c.b16 %v1177, %v1175
    %1306 = vmatpush.bf16.msra.mxu0 %v1192
    %1307 = vmatpush.bf16.msra.mxu0 %v1190
    %1308 = vmatpush.bf16.msra.mxu0 %v1188
    %1309 = vmatpush.bf16.msra.mxu0 %v1186
    %1310 = vmatpush.bf16.msra.mxu0 %v1184
    %1311 = vmatpush.bf16.msra.mxu0 %v1182
    %1312 = vmatpush.bf16.msra.mxu0 %v1180
    %1313 = vmatpush.bf16.msra.mxu0 %v1178
    %1314 = vmatmul.bf16.gmra.mxu0 %v912
    %v1315 = vpop.f32.mrf.mxu0
    %v1316 = vadd.f32 %v982, %v1315
    %v1317 = vpop.f32.mrf.mxu0
    %v1318 = vadd.f32 %v982, %v1317
    %1319 = vdwg.mxu0
    %1320 = vmatpush.bf16.msra.mxu0 %v1208
    %1321 = vmatpush.bf16.msra.mxu0 %v1206
    %1322 = vmatpush.bf16.msra.mxu0 %v1204
    %1323 = vmatpush.bf16.msra.mxu0 %v1202
    %1324 = vmatpush.bf16.msra.mxu0 %v1200
    %1325 = vmatpush.bf16.msra.mxu0 %v1198
    %1326 = vmatpush.bf16.msra.mxu0 %v1196
    %1327 = vmatpush.bf16.msra.mxu0 %v1194
    %1328 = vmatmul.bf16.gmra.mxu0 %v913
    %v1329 = vpop.f32.mrf.mxu0
    %v1330 = vadd.f32 %v1316, %v1329
    %v1331 = vpop.f32.mrf.mxu0
    %v1332 = vadd.f32 %v1318, %v1331
    %1333 = vdwg.mxu0
    %1334 = vmatpush.bf16.msra.mxu0 %v1224
    %1335 = vmatpush.bf16.msra.mxu0 %v1222
    %1336 = vmatpush.bf16.msra.mxu0 %v1220
    %1337 = vmatpush.bf16.msra.mxu0 %v1218
    %1338 = vmatpush.bf16.msra.mxu0 %v1216
    %1339 = vmatpush.bf16.msra.mxu0 %v1214
    %1340 = vmatpush.bf16.msra.mxu0 %v1212
    %1341 = vmatpush.bf16.msra.mxu0 %v1210
    %1342 = vmatmul.bf16.gmra.mxu0 %v914
    %v1343 = vpop.f32.mrf.mxu0
    %v1344 = vadd.f32 %v1330, %v1343
    %v1345 = vpop.f32.mrf.mxu0
    %v1346 = vadd.f32 %v1332, %v1345
    %1347 = vdwg.mxu0
    %1348 = vmatpush.bf16.msra.mxu0 %v1240
    %1349 = vmatpush.bf16.msra.mxu0 %v1238
    %1350 = vmatpush.bf16.msra.mxu0 %v1236
    %1351 = vmatpush.bf16.msra.mxu0 %v1234
    %1352 = vmatpush.bf16.msra.mxu0 %v1232
    %1353 = vmatpush.bf16.msra.mxu0 %v1230
    %1354 = vmatpush.bf16.msra.mxu0 %v1228
    %1355 = vmatpush.bf16.msra.mxu0 %v1226
    %1356 = vmatmul.bf16.gmra.mxu0 %v915
    %v1357 = vpop.f32.mrf.mxu0
    %v1358 = vadd.f32 %v1344, %v1357
    %v1359 = vpop.f32.mrf.mxu0
    %v1360 = vadd.f32 %v1346, %v1359
    %1361 = vdwg.mxu0
    %1362 = vmatpush.bf16.msra.mxu0 %v1193
    %1363 = vmatpush.bf16.msra.mxu0 %v1191
    %1364 = vmatpush.bf16.msra.mxu0 %v1189
    %1365 = vmatpush.bf16.msra.mxu0 %v1187
    %1366 = vmatpush.bf16.msra.mxu0 %v1185
    %1367 = vmatpush.bf16.msra.mxu0 %v1183
    %1368 = vmatpush.bf16.msra.mxu0 %v1181
    %1369 = vmatpush.bf16.msra.mxu0 %v1179
    %1370 = vmatmul.bf16.gmra.mxu0 %v912
    %v1371 = vpop.f32.mrf.mxu0
    %v1372 = vadd.f32 %v983, %v1371
    %v1373 = vpop.f32.mrf.mxu0
    %v1374 = vadd.f32 %v983, %v1373
    %1375 = vdwg.mxu0
    %1376 = vmatpush.bf16.msra.mxu0 %v1209
    %1377 = vmatpush.bf16.msra.mxu0 %v1207
    %1378 = vmatpush.bf16.msra.mxu0 %v1205
    %1379 = vmatpush.bf16.msra.mxu0 %v1203
    %1380 = vmatpush.bf16.msra.mxu0 %v1201
    %1381 = vmatpush.bf16.msra.mxu0 %v1199
    %1382 = vmatpush.bf16.msra.mxu0 %v1197
    %1383 = vmatpush.bf16.msra.mxu0 %v1195
    %1384 = vmatmul.bf16.gmra.mxu0 %v913
    %v1385 = vpop.f32.mrf.mxu0
    %v1386 = vadd.f32 %v1372, %v1385
    %v1387 = vpop.f32.mrf.mxu0
    %v1388 = vadd.f32 %v1374, %v1387
    %1389 = vdwg.mxu0
    %1390 = vmatpush.bf16.msra.mxu0 %v1225
    %1391 = vmatpush.bf16.msra.mxu0 %v1223
    %1392 = vmatpush.bf16.msra.mxu0 %v1221
    %1393 = vmatpush.bf16.msra.mxu0 %v1219
    %1394 = vmatpush.bf16.msra.mxu0 %v1217
    %1395 = vmatpush.bf16.msra.mxu0 %v1215
    %1396 = vmatpush.bf16.msra.mxu0 %v1213
    %1397 = vmatpush.bf16.msra.mxu0 %v1211
    %1398 = vmatmul.bf16.gmra.mxu0 %v914
    %v1399 = vpop.f32.mrf.mxu0
    %v1400 = vadd.f32 %v1386, %v1399
    %v1401 = vpop.f32.mrf.mxu0
    %v1402 = vadd.f32 %v1388, %v1401
    %1403 = vdwg.mxu0
    %1404 = vmatpush.bf16.msra.mxu0 %v1241
    %1405 = vmatpush.bf16.msra.mxu0 %v1239
    %1406 = vmatpush.bf16.msra.mxu0 %v1237
    %1407 = vmatpush.bf16.msra.mxu0 %v1235
    %1408 = vmatpush.bf16.msra.mxu0 %v1233
    %1409 = vmatpush.bf16.msra.mxu0 %v1231
    %1410 = vmatpush.bf16.msra.mxu0 %v1229
    %1411 = vmatpush.bf16.msra.mxu0 %v1227
    %1412 = vmatmul.bf16.gmra.mxu0 %v915
    %v1413 = vpop.f32.mrf.mxu0
    %v1414 = vadd.f32 %v1400, %v1413
    %v1415 = vpop.f32.mrf.mxu0
    %v1416 = vadd.f32 %v1402, %v1415
    %1417 = vdwg.mxu0
    %1418 = vst [vmem:[#allocation13] sm:$0xff] %v1358
    %1419 = vst [vmem:[#allocation13 + $0x8] sm:$0xff] %v1414
    %1420 = vst [vmem:[#allocation13 + $0x10] sm:$0xff] %v1360
    %1421 = vst [vmem:[#allocation13 + $0x18] sm:$0xff] %v1416
    // Predicated region
    $region54: #{tpu_custom_call.1} parent=1 // pred_check
      _
    $region55: #{tpu_custom_call.1} parent=1 // pred_check_branch
      %1423 = sbr.rel (0) target = $region57
    $region56: #{tpu_custom_call.1} parent=1 // pred_region
      %1425 = vsyncadd [#allocation4], 0
      %s1426 = sshll.u32 [#allocation13], 4
      %s1427 = int_to_ptr.vmem [resolvable:$true] %s1426
      %s1428 = sshll.u32 %s7, 4
      %s1429 = int_to_ptr.hbm [resolvable:$true] %s1428
      %1434 = dma.vmem_to_hbm [thread:$0]  %s1427, 512, %s1429, [#allocation4], 256, 256, 16
    $region57: #{tpu_custom_call.1} parent=1 // pred_fallthru
      _
    // Predicated region
    $region58: #{tpu_custom_call.1} parent=1 // pred_check
      _
    $region59: #{tpu_custom_call.1} parent=1 // pred_check_branch
      %1436 = sbr.rel (0) target = $region61
    $region60: #{tpu_custom_call.1} parent=1 // pred_region
      %1438 = dma.done [#allocation4], 512
    $region61: #{tpu_custom_call.1} parent=1 // pred_fallthru
      _
    %1439 = vsyncpa [#allocation3], 1
    %1440 = vsyncpa [#allocation6], 1
    %1441 = vsyncpa [#allocation9], 1
    %1442 = vsyncpa [#allocation12], 1
    %1443 = vsyncpa [#allocation4], 1

// kernel: tpu_custom_call.1
$region0: #{tpu_custom_call.1}
  #allocation0 [shape = 'u32[]', space=smem, size = 0x4, offset = 0x4, fixed_abs, tag = 'smem constant byte address 0x4 - core index']
  #allocation1 [shape = 'u32[72,128]{1,0:T(1,128)}', space=vmem, size = 0x9000, scoped, tag = 'internal scratch']
  %s0 = inlined_call_operand.hbm [shape: f32[16,256], index: 0, kind: input, shape index: {}]
  %s1 = inlined_call_operand.hbm [shape: f32[1,256], index: 1, kind: input, shape index: {}]
  %s2 = inlined_call_operand.hbm [shape: f32[1,256], index: 2, kind: input, shape index: {}]
  %s3 = inlined_call_operand.hbm [shape: bf16[256,512], index: 3, kind: input, shape index: {}]
  %s4 = inlined_call_operand.hbm [shape: f32[1,512], index: 4, kind: input, shape index: {}]
  %s5 = inlined_call_operand.hbm [shape: bf16[512,256], index: 5, kind: input, shape index: {}]
  %s6 = inlined_call_operand.vmem [shape: f32[1,256], index: 6, kind: input, shape index: {}]
  %s7 = inlined_call_operand.hbm [shape: f32[16,256], index: 7, kind: output, shape index: {}]
  %s8 = sld [smem:[#allocation0]]
  $region62: #{tpu_custom_call.1} parent=0
    _
  %s10 = ssub.s32 1, %s8
  %s11 = scalar_select 0, %s10, %s8
  $region1: #{tpu_custom_call.1} parent=0
    #allocation2 [shape = 'u8[16384]{0}', space=vmem, size = 0x4000, scoped, tag = 'input window, operand 0, single buffered']
    #allocation3 [shape = 's32[1]{0}', space=sflag, size = 0x4, scoped, tag = 'scoped memory for tpu_custom_call.1']
    #allocation4 [shape = 's32[1]{0}', space=sflag, size = 0x4, scoped, tag = 'scoped memory for tpu_custom_call.1']
    #allocation5 [shape = 'u8[1024]{0}', space=vmem, size = 0x400, scoped, tag = 'input window, operand 1, single buffered']
    #allocation6 [shape = 's32[1]{0}', space=sflag, size = 0x4, scoped, tag = 'scoped memory for tpu_custom_call.1']
    #allocation7 [shape = 'u8[1024]{0}', space=vmem, size = 0x400, scoped, tag = 'input window, operand 2, single buffered']
    #allocation8 [shape = 'u8[262144]{0}', space=vmem, size = 0x40000, scoped, tag = 'input window, operand 3, single buffered']
    #allocation9 [shape = 's32[1]{0}', space=sflag, size = 0x4, scoped, tag = 'scoped memory for tpu_custom_call.1']
    #allocation10 [shape = 'u8[2048]{0}', space=vmem, size = 0x800, scoped, tag = 'input window, operand 4, single buffered']
    #allocation11 [shape = 'u8[262144]{0}', space=vmem, size = 0x40000, scoped, tag = 'input window, operand 5, single buffered']
    #allocation12 [shape = 's32[1]{0}', space=sflag, size = 0x4, scoped, tag = 'scoped memory for tpu_custom_call.1']
    #allocation13 [shape = 'u8[16384]{0}', space=vmem, size = 0x4000, scoped, tag = 'output window, operand 0, single buffered']
    %12 = vsyncpa [#allocation3], 0
    %13 = vsyncpa [#allocation6], 0
    %14 = vsyncpa [#allocation9], 0
    %15 = vsyncpa [#allocation12], 0
    %16 = vsyncpa [#allocation4], 0
    // Predicated region
    $region2: #{tpu_custom_call.1} parent=1 // pred_check
      _
    $region3: #{tpu_custom_call.1} parent=1 // pred_check_branch
      %18 = sbr.rel (0) target = $region5
    $region4: #{tpu_custom_call.1} parent=1 // pred_region
      %20 = vsyncadd [#allocation3], 0
      %s21 = sshll.u32 %s0, 4
      %s22 = int_to_ptr.hbm [resolvable:$true] %s21
      %s23 = sshll.u32 [#allocation2], 4
      %s24 = int_to_ptr.vmem [resolvable:$true] %s23
      %29 = dma.hbm_to_vmem [thread:$0]  %s22, 512, %s24, [#allocation3], 256, 256, 16
    $region5: #{tpu_custom_call.1} parent=1 // pred_fallthru
      _
    // Predicated region
    $region6: #{tpu_custom_call.1} parent=1 // pred_check
      _
    $region7: #{tpu_custom_call.1} parent=1 // pred_check_branch
      %31 = sbr.rel (0) target = $region9
    $region8: #{tpu_custom_call.1} parent=1 // pred_region
      %33 = vsyncadd [#allocation6], 0
      %s35 = sshll.u32 %s1, 4
      %s36 = int_to_ptr.hbm [resolvable:$true] %s35
      %s37 = sshll.u32 [#allocation5], 4
      %s38 = int_to_ptr.vmem [resolvable:$true] %s37
      %40 = dma.hbm_to_vmem [thread:$0]  %s36, 32, %s38, [#allocation6]
    $region9: #{tpu_custom_call.1} parent=1 // pred_fallthru
      _
    // Predicated region
    $region10: #{tpu_custom_call.1} parent=1 // pred_check
      _
    $region11: #{tpu_custom_call.1} parent=1 // pred_check_branch
      %42 = sbr.rel (0) target = $region13
    $region12: #{tpu_custom_call.1} parent=1 // pred_region
      %44 = vsyncadd [#allocation6], 0
      %s46 = sshll.u32 %s2, 4
      %s47 = int_to_ptr.hbm [resolvable:$true] %s46
      %s48 = sshll.u32 [#allocation7], 4
      %s49 = int_to_ptr.vmem [resolvable:$true] %s48
      %51 = dma.hbm_to_vmem [thread:$0]  %s47, 32, %s49, [#allocation6]
    $region13: #{tpu_custom_call.1} parent=1 // pred_fallthru
      _
    // Predicated region
    $region14: #{tpu_custom_call.1} parent=1 // pred_check
      _
    $region15: #{tpu_custom_call.1} parent=1 // pred_check_branch
      %53 = sbr.rel (0) target = $region17
    $region16: #{tpu_custom_call.1} parent=1 // pred_region
      %55 = vsyncadd [#allocation9], 0
      %s56 = sshll.u32 %s3, 4
      %s57 = int_to_ptr.hbm [resolvable:$true] %s56
      %s58 = sshll.u32 [#allocation8], 4
      %s59 = int_to_ptr.vmem [resolvable:$true] %s58
      %64 = dma.hbm_to_vmem [thread:$0]  %s57, 8192, %s59, [#allocation9], 256, 256, 16
    $region17: #{tpu_custom_call.1} parent=1 // pred_fallthru
      _
    // Predicated region
    $region18: #{tpu_custom_call.1} parent=1 // pred_check
      _
    $region19: #{tpu_custom_call.1} parent=1 // pred_check_branch
      %66 = sbr.rel (0) target = $region21
    $region20: #{tpu_custom_call.1} parent=1 // pred_region
      %68 = vsyncadd [#allocation9], 0
      %s70 = sshll.u32 %s4, 4
      %s71 = int_to_ptr.hbm [resolvable:$true] %s70
      %s72 = sshll.u32 [#allocation10], 4
      %s73 = int_to_ptr.vmem [resolvable:$true] %s72
      %75 = dma.hbm_to_vmem [thread:$0]  %s71, 64, %s73, [#allocation9]
    $region21: #{tpu_custom_call.1} parent=1 // pred_fallthru
      _
    // Predicated region
    $region22: #{tpu_custom_call.1} parent=1 // pred_check
      _
    $region23: #{tpu_custom_call.1} parent=1 // pred_check_branch
      %77 = sbr.rel (0) target = $region25
    $region24: #{tpu_custom_call.1} parent=1 // pred_region
      %79 = vsyncadd [#allocation12], 0
      %s80 = sshll.u32 %s5, 4
      %s81 = int_to_ptr.hbm [resolvable:$true] %s80
      %s82 = sshll.u32 [#allocation11], 4
      %s83 = int_to_ptr.vmem [resolvable:$true] %s82
      %88 = dma.hbm_to_vmem [thread:$0]  %s81, 8192, %s83, [#allocation12], 128, 128, 8
    $region25: #{tpu_custom_call.1} parent=1 // pred_fallthru
      _
    // Predicated region
    $region26: #{tpu_custom_call.1} parent=1 // pred_check
      _
    $region27: #{tpu_custom_call.1} parent=1 // pred_check_branch
      %90 = sbr.rel (0) target = $region29
    $region28: #{tpu_custom_call.1} parent=1 // pred_region
      _
    $region29: #{tpu_custom_call.1} parent=1 // pred_fallthru
      _
    // Predicated region
    $region30: #{tpu_custom_call.1} parent=1 // pred_check
      _
    $region31: #{tpu_custom_call.1} parent=1 // pred_check_branch
      %92 = sbr.rel (0) target = $region33
    $region32: #{tpu_custom_call.1} parent=1 // pred_region
      %94 = dma.done [#allocation3], 512
    $region33: #{tpu_custom_call.1} parent=1 // pred_fallthru
      _
    // Predicated region
    $region34: #{tpu_custom_call.1} parent=1 // pred_check
      _
    $region35: #{tpu_custom_call.1} parent=1 // pred_check_branch
      %96 = sbr.rel (0) target = $region37
    $region36: #{tpu_custom_call.1} parent=1 // pred_region
      %98 = dma.done [#allocation6], 32
    $region37: #{tpu_custom_call.1} parent=1 // pred_fallthru
      _
    // Predicated region
    $region38: #{tpu_custom_call.1} parent=1 // pred_check
      _
    $region39: #{tpu_custom_call.1} parent=1 // pred_check_branch
      %100 = sbr.rel (0) target = $region41
    $region40: #{tpu_custom_call.1} parent=1 // pred_region
      %102 = dma.done [#allocation6], 32
    $region41: #{tpu_custom_call.1} parent=1 // pred_fallthru
      _
    // Predicated region
    $region42: #{tpu_custom_call.1} parent=1 // pred_check
      _
    $region43: #{tpu_custom_call.1} parent=1 // pred_check_branch
      %104 = sbr.rel (0) target = $region45
    $region44: #{tpu_custom_call.1} parent=1 // pred_region
      %106 = dma.done [#allocation9], 8192
    $region45: #{tpu_custom_call.1} parent=1 // pred_fallthru
      _
    // Predicated region
    $region46: #{tpu_custom_call.1} parent=1 // pred_check
      _
    $region47: #{tpu_custom_call.1} parent=1 // pred_check_branch
      %108 = sbr.rel (0) target = $region49
    $region48: #{tpu_custom_call.1} parent=1 // pred_region
      %110 = dma.done [#allocation9], 64
    $region49: #{tpu_custom_call.1} parent=1 // pred_fallthru
      _
    // Predicated region
    $region50: #{tpu_custom_call.1} parent=1 // pred_check
      _
    $region51: #{tpu_custom_call.1} parent=1 // pred_check_branch
      %112 = sbr.rel (0) target = $region53
    $region52: #{tpu_custom_call.1} parent=1 // pred_region
      %114 = dma.done [#allocation12], 8192
    $region53: #{tpu_custom_call.1} parent=1 // pred_fallthru
      _
    %v115 = vld [vmem:[#allocation2] sm:$0xff]
    %v116 = vld [vmem:[#allocation2 + $0x8] sm:$0xff]
    %v117 = vld [vmem:[#allocation2 + $0x10] sm:$0xff]
    %v118 = vld [vmem:[#allocation2 + $0x18] sm:$0xff]
    %v119 = vadd.f32 %v115, %v116
    %120 = vadd.xlane.f32.xlu0 %v119
    %v121 = vpop.xlane.xlu0 %120
    %v122 = vadd.f32 %v117, %v118
    %123 = vadd.xlane.f32.xlu0 %v122
    %v124 = vpop.xlane.xlu0 %123
    %v125 = vrcp.pop 256.0
    %v126 = vmul.f32 256.0, %v125
    %v127 = vsub.f32 1.0, %v126
    %v128 = vmul.f32 %v125, %v127
    %v129 = vadd.f32 %v125, %v128
    %vm130 = vweird.f32 %v125
    %v131 = vsel %vm130, %v125, %v129
    %v132 = vmul.f32 %v121, %v131
    %v133 = vmul.f32 %v124, %v131
    %v134 = vsub.f32 %v115, %v132
    %v135 = vsub.f32 %v116, %v132
    %v136 = vsub.f32 %v117, %v133
    %v137 = vsub.f32 %v118, %v133
    %v138 = vmul.f32 %v134, %v134
    %v139 = vmul.f32 %v135, %v135
    %v140 = vmul.f32 %v136, %v136
    %v141 = vmul.f32 %v137, %v137
    %v142 = vadd.f32 %v138, %v139
    %143 = vadd.xlane.f32.xlu0 %v142
    %v144 = vpop.xlane.xlu0 %143
    %v145 = vadd.f32 %v140, %v141
    %146 = vadd.xlane.f32.xlu0 %v145
    %v147 = vpop.xlane.xlu0 %146
    %v148 = vmul.f32 %v144, %v131
    %v149 = vmul.f32 %v147, %v131
    %v150 = vadd.f32 %v148, 1e-05
    %v151 = vadd.f32 %v149, 1e-05
    %v152 = vrsqrt.pop %v150
    %v153 = vmul.f32 %v152, %v150
    %v154 = vmul.f32 %v153, %v152
    %v155 = vmul.f32 0.5, %v154
    %v156 = vsub.f32 1.5, %v155
    %v157 = vmul.f32 %v152, %v156
    %vm158 = vweird.f32 %v150
    %vm159 = vweird.f32 %v152
    %vm160 = vmor %vm158, %vm159
    %v161 = vsel %vm160, %v152, %v157
    %v162 = vrsqrt.pop %v151
    %v163 = vmul.f32 %v162, %v151
    %v164 = vmul.f32 %v163, %v162
    %v165 = vmul.f32 0.5, %v164
    %v166 = vsub.f32 1.5, %v165
    %v167 = vmul.f32 %v162, %v166
    %vm168 = vweird.f32 %v151
    %vm169 = vweird.f32 %v162
    %vm170 = vmor %vm168, %vm169
    %v171 = vsel %vm170, %v162, %v167
    %v172 = vmul.f32 %v134, %v161
    %v173 = vmul.f32 %v135, %v161
    %v174 = vmul.f32 %v136, %v171
    %v175 = vmul.f32 %v137, %v171
    %v176 = vld [vmem:[#allocation5] sm:$0x3]
    %v178 = vperm.slane %v176, 0
    %v179 = vperm.slane %v176, 1
    %v182 = vmul.f32 %v172, %v178
    %v183 = vmul.f32 %v173, %v179
    %v184 = vmul.f32 %v174, %v178
    %v185 = vmul.f32 %v175, %v179
    %v186 = vld [vmem:[#allocation7] sm:$0x3]
    %v188 = vperm.slane %v186, 0
    %v189 = vperm.slane %v186, 1
    %v192 = vadd.f32 %v182, %v188
    %v193 = vadd.f32 %v183, %v189
    %v194 = vadd.f32 %v184, %v188
    %v195 = vadd.f32 %v185, %v189
    %v196 = vpack.c.bf16 %v194, %v192
    %v197 = vpack.c.bf16 %v195, %v193
    %v198 = vld [vmem:[#allocation8] sm:$0xff]
    %v199 = vld [vmem:[#allocation8 + $0x8] sm:$0xff]
    %v200 = vld [vmem:[#allocation8 + $0x10] sm:$0xff]
    %v201 = vld [vmem:[#allocation8 + $0x18] sm:$0xff]
    %v202 = vld [vmem:[#allocation8 + $0x20] sm:$0xff]
    %v203 = vld [vmem:[#allocation8 + $0x28] sm:$0xff]
    %v204 = vld [vmem:[#allocation8 + $0x30] sm:$0xff]
    %v205 = vld [vmem:[#allocation8 + $0x38] sm:$0xff]
    %v206 = vld [vmem:[#allocation8 + $0x40] sm:$0xff]
    %v207 = vld [vmem:[#allocation8 + $0x48] sm:$0xff]
    %v208 = vld [vmem:[#allocation8 + $0x50] sm:$0xff]
    %v209 = vld [vmem:[#allocation8 + $0x58] sm:$0xff]
    %v210 = vld [vmem:[#allocation8 + $0x60] sm:$0xff]
    %v211 = vld [vmem:[#allocation8 + $0x68] sm:$0xff]
    %v212 = vld [vmem:[#allocation8 + $0x70] sm:$0xff]
    %v213 = vld [vmem:[#allocation8 + $0x78] sm:$0xff]
    %v214 = vld [vmem:[#allocation8 + $0x80] sm:$0xff]
    %v215 = vld [vmem:[#allocation8 + $0x88] sm:$0xff]
    %v216 = vld [vmem:[#allocation8 + $0x90] sm:$0xff]
    %v217 = vld [vmem:[#allocation8 + $0x98] sm:$0xff]
    %v218 = vld [vmem:[#allocation8 + $0xa0] sm:$0xff]
    %v219 = vld [vmem:[#allocation8 + $0xa8] sm:$0xff]
    %v220 = vld [vmem:[#allocation8 + $0xb0] sm:$0xff]
    %v221 = vld [vmem:[#allocation8 + $0xb8] sm:$0xff]
    %v222 = vld [vmem:[#allocation8 + $0xc0] sm:$0xff]
    %v223 = vld [vmem:[#allocation8 + $0xc8] sm:$0xff]
    %v224 = vld [vmem:[#allocation8 + $0xd0] sm:$0xff]
    %v225 = vld [vmem:[#allocation8 + $0xd8] sm:$0xff]
    %v226 = vld [vmem:[#allocation8 + $0xe0] sm:$0xff]
    %v227 = vld [vmem:[#allocation8 + $0xe8] sm:$0xff]
    %v228 = vld [vmem:[#allocation8 + $0xf0] sm:$0xff]
    %v229 = vld [vmem:[#allocation8 + $0xf8] sm:$0xff]
    %v230 = vld [vmem:[#allocation8 + $0x100] sm:$0xff]
    %v231 = vld [vmem:[#allocation8 + $0x108] sm:$0xff]
    %v232 = vld [vmem:[#allocation8 + $0x110] sm:$0xff]
    %v233 = vld [vmem:[#allocation8 + $0x118] sm:$0xff]
    %v234 = vld [vmem:[#allocation8 + $0x120] sm:$0xff]
    %v235 = vld [vmem:[#allocation8 + $0x128] sm:$0xff]
    %v236 = vld [vmem:[#allocation8 + $0x130] sm:$0xff]
    %v237 = vld [vmem:[#allocation8 + $0x138] sm:$0xff]
    %v238 = vld [vmem:[#allocation8 + $0x140] sm:$0xff]
    %v239 = vld [vmem:[#allocation8 + $0x148] sm:$0xff]
    %v240 = vld [vmem:[#allocation8 + $0x150] sm:$0xff]
    %v241 = vld [vmem:[#allocation8 + $0x158] sm:$0xff]
    %v242 = vld [vmem:[#allocation8 + $0x160] sm:$0xff]
    %v243 = vld [vmem:[#allocation8 + $0x168] sm:$0xff]
    %v244 = vld [vmem:[#allocation8 + $0x170] sm:$0xff]
    %v245 = vld [vmem:[#allocation8 + $0x178] sm:$0xff]
    %v246 = vld [vmem:[#allocation8 + $0x180] sm:$0xff]
    %v247 = vld [vmem:[#allocation8 + $0x188] sm:$0xff]
    %v248 = vld [vmem:[#allocation8 + $0x190] sm:$0xff]
    %v249 = vld [vmem:[#allocation8 + $0x198] sm:$0xff]
    %v250 = vld [vmem:[#allocation8 + $0x1a0] sm:$0xff]
    %v251 = vld [vmem:[#allocation8 + $0x1a8] sm:$0xff]
    %v252 = vld [vmem:[#allocation8 + $0x1b0] sm:$0xff]
    %v253 = vld [vmem:[#allocation8 + $0x1b8] sm:$0xff]
    %v254 = vld [vmem:[#allocation8 + $0x1c0] sm:$0xff]
    %v255 = vld [vmem:[#allocation8 + $0x1c8] sm:$0xff]
    %v256 = vld [vmem:[#allocation8 + $0x1d0] sm:$0xff]
    %v257 = vld [vmem:[#allocation8 + $0x1d8] sm:$0xff]
    %v258 = vld [vmem:[#allocation8 + $0x1e0] sm:$0xff]
    %v259 = vld [vmem:[#allocation8 + $0x1e8] sm:$0xff]
    %v260 = vld [vmem:[#allocation8 + $0x1f0] sm:$0xff]
    %v261 = vld [vmem:[#allocation8 + $0x1f8] sm:$0xff]
    %v262 = vld [vmem:[#allocation10] sm:$0xf]
    %v264 = vperm.slane %v262, 0
    %v265 = vperm.slane %v262, 1
    %v266 = vperm.slane %v262, 2
    %v267 = vperm.slane %v262, 3
    %v336 = vunpack.c.l.b16 %v198
    %v337 = vunpack.c.h.b16 %v198
    %v338 = vunpack.c.l.b16 %v199
    %v339 = vunpack.c.h.b16 %v199
    %v340 = vunpack.c.l.b16 %v200
    %v341 = vunpack.c.h.b16 %v200
    %v342 = vunpack.c.l.b16 %v201
    %v343 = vunpack.c.h.b16 %v201
    %v344 = vunpack.c.l.b16 %v202
    %v345 = vunpack.c.h.b16 %v202
    %v346 = vunpack.c.l.b16 %v203
    %v347 = vunpack.c.h.b16 %v203
    %v348 = vunpack.c.l.b16 %v204
    %v349 = vunpack.c.h.b16 %v204
    %v350 = vunpack.c.l.b16 %v205
    %v351 = vunpack.c.h.b16 %v205
    %v352 = vunpack.c.l.b16 %v206
    %v353 = vunpack.c.h.b16 %v206
    %v354 = vunpack.c.l.b16 %v207
    %v355 = vunpack.c.h.b16 %v207
    %v356 = vunpack.c.l.b16 %v208
    %v357 = vunpack.c.h.b16 %v208
    %v358 = vunpack.c.l.b16 %v209
    %v359 = vunpack.c.h.b16 %v209
    %v360 = vunpack.c.l.b16 %v210
    %v361 = vunpack.c.h.b16 %v210
    %v362 = vunpack.c.l.b16 %v211
    %v363 = vunpack.c.h.b16 %v211
    %v364 = vunpack.c.l.b16 %v212
    %v365 = vunpack.c.h.b16 %v212
    %v366 = vunpack.c.l.b16 %v213
    %v367 = vunpack.c.h.b16 %v213
    %v368 = vunpack.c.l.b16 %v214
    %v369 = vunpack.c.h.b16 %v214
    %v370 = vunpack.c.l.b16 %v215
    %v371 = vunpack.c.h.b16 %v215
    %v372 = vunpack.c.l.b16 %v216
    %v373 = vunpack.c.h.b16 %v216
    %v374 = vunpack.c.l.b16 %v217
    %v375 = vunpack.c.h.b16 %v217
    %v376 = vunpack.c.l.b16 %v218
    %v377 = vunpack.c.h.b16 %v218
    %v378 = vunpack.c.l.b16 %v219
    %v379 = vunpack.c.h.b16 %v219
    %v380 = vunpack.c.l.b16 %v220
    %v381 = vunpack.c.h.b16 %v220
    %v382 = vunpack.c.l.b16 %v221
    %v383 = vunpack.c.h.b16 %v221
    %v384 = vunpack.c.l.b16 %v222
    %v385 = vunpack.c.h.b16 %v222
    %v386 = vunpack.c.l.b16 %v223
    %v387 = vunpack.c.h.b16 %v223
    %v388 = vunpack.c.l.b16 %v224
    %v389 = vunpack.c.h.b16 %v224
    %v390 = vunpack.c.l.b16 %v225
    %v391 = vunpack.c.h.b16 %v225
    %v392 = vunpack.c.l.b16 %v226
    %v393 = vunpack.c.h.b16 %v226
    %v394 = vunpack.c.l.b16 %v227
    %v395 = vunpack.c.h.b16 %v227
    %v396 = vunpack.c.l.b16 %v228
    %v397 = vunpack.c.h.b16 %v228
    %v398 = vunpack.c.l.b16 %v229
    %v399 = vunpack.c.h.b16 %v229
    %v400 = vunpack.c.l.b16 %v230
    %v401 = vunpack.c.h.b16 %v230
    %v402 = vunpack.c.l.b16 %v231
    %v403 = vunpack.c.h.b16 %v231
    %v404 = vunpack.c.l.b16 %v232
    %v405 = vunpack.c.h.b16 %v232
    %v406 = vunpack.c.l.b16 %v233
    %v407 = vunpack.c.h.b16 %v233
    %v408 = vunpack.c.l.b16 %v234
    %v409 = vunpack.c.h.b16 %v234
    %v410 = vunpack.c.l.b16 %v235
    %v411 = vunpack.c.h.b16 %v235
    %v412 = vunpack.c.l.b16 %v236
    %v413 = vunpack.c.h.b16 %v236
    %v414 = vunpack.c.l.b16 %v237
    %v415 = vunpack.c.h.b16 %v237
    %v416 = vunpack.c.l.b16 %v238
    %v417 = vunpack.c.h.b16 %v238
    %v418 = vunpack.c.l.b16 %v239
    %v419 = vunpack.c.h.b16 %v239
    %v420 = vunpack.c.l.b16 %v240
    %v421 = vunpack.c.h.b16 %v240
    %v422 = vunpack.c.l.b16 %v241
    %v423 = vunpack.c.h.b16 %v241
    %v424 = vunpack.c.l.b16 %v242
    %v425 = vunpack.c.h.b16 %v242
    %v426 = vunpack.c.l.b16 %v243
    %v427 = vunpack.c.h.b16 %v243
    %v428 = vunpack.c.l.b16 %v244
    %v429 = vunpack.c.h.b16 %v244
    %v430 = vunpack.c.l.b16 %v245
    %v431 = vunpack.c.h.b16 %v245
    %v432 = vunpack.c.l.b16 %v246
    %v433 = vunpack.c.h.b16 %v246
    %v434 = vunpack.c.l.b16 %v247
    %v435 = vunpack.c.h.b16 %v247
    %v436 = vunpack.c.l.b16 %v248
    %v437 = vunpack.c.h.b16 %v248
    %v438 = vunpack.c.l.b16 %v249
    %v439 = vunpack.c.h.b16 %v249
    %v440 = vunpack.c.l.b16 %v250
    %v441 = vunpack.c.h.b16 %v250
    %v442 = vunpack.c.l.b16 %v251
    %v443 = vunpack.c.h.b16 %v251
    %v444 = vunpack.c.l.b16 %v252
    %v445 = vunpack.c.h.b16 %v252
    %v446 = vunpack.c.l.b16 %v253
    %v447 = vunpack.c.h.b16 %v253
    %v448 = vunpack.c.l.b16 %v254
    %v449 = vunpack.c.h.b16 %v254
    %v450 = vunpack.c.l.b16 %v255
    %v451 = vunpack.c.h.b16 %v255
    %v452 = vunpack.c.l.b16 %v256
    %v453 = vunpack.c.h.b16 %v256
    %v454 = vunpack.c.l.b16 %v257
    %v455 = vunpack.c.h.b16 %v257
    %v456 = vunpack.c.l.b16 %v258
    %v457 = vunpack.c.h.b16 %v258
    %v458 = vunpack.c.l.b16 %v259
    %v459 = vunpack.c.h.b16 %v259
    %v460 = vunpack.c.l.b16 %v260
    %v461 = vunpack.c.h.b16 %v260
    %v462 = vunpack.c.l.b16 %v261
    %v463 = vunpack.c.h.b16 %v261
    %v464 = vpack.c.b16 %v340, %v336
    %v465 = vpack.c.b16 %v341, %v337
    %v466 = vpack.c.b16 %v342, %v338
    %v467 = vpack.c.b16 %v343, %v339
    %v468 = vpack.c.b16 %v348, %v344
    %v469 = vpack.c.b16 %v349, %v345
    %v470 = vpack.c.b16 %v350, %v346
    %v471 = vpack.c.b16 %v351, %v347
    %v472 = vpack.c.b16 %v356, %v352
    %v473 = vpack.c.b16 %v357, %v353
    %v474 = vpack.c.b16 %v358, %v354
    %v475 = vpack.c.b16 %v359, %v355
    %v476 = vpack.c.b16 %v364, %v360
    %v477 = vpack.c.b16 %v365, %v361
    %v478 = vpack.c.b16 %v366, %v362
    %v479 = vpack.c.b16 %v367, %v363
    %v480 = vpack.c.b16 %v372, %v368
    %v481 = vpack.c.b16 %v373, %v369
    %v482 = vpack.c.b16 %v374, %v370
    %v483 = vpack.c.b16 %v375, %v371
    %v484 = vpack.c.b16 %v380, %v376
    %v485 = vpack.c.b16 %v381, %v377
    %v486 = vpack.c.b16 %v382, %v378
    %v487 = vpack.c.b16 %v383, %v379
    %v488 = vpack.c.b16 %v388, %v384
    %v489 = vpack.c.b16 %v389, %v385
    %v490 = vpack.c.b16 %v390, %v386
    %v491 = vpack.c.b16 %v391, %v387
    %v492 = vpack.c.b16 %v396, %v392
    %v493 = vpack.c.b16 %v397, %v393
    %v494 = vpack.c.b16 %v398, %v394
    %v495 = vpack.c.b16 %v399, %v395
    %v496 = vpack.c.b16 %v404, %v400
    %v497 = vpack.c.b16 %v405, %v401
    %v498 = vpack.c.b16 %v406, %v402
    %v499 = vpack.c.b16 %v407, %v403
    %v500 = vpack.c.b16 %v412, %v408
    %v501 = vpack.c.b16 %v413, %v409
    %v502 = vpack.c.b16 %v414, %v410
    %v503 = vpack.c.b16 %v415, %v411
    %v504 = vpack.c.b16 %v420, %v416
    %v505 = vpack.c.b16 %v421, %v417
    %v506 = vpack.c.b16 %v422, %v418
    %v507 = vpack.c.b16 %v423, %v419
    %v508 = vpack.c.b16 %v428, %v424
    %v509 = vpack.c.b16 %v429, %v425
    %v510 = vpack.c.b16 %v430, %v426
    %v511 = vpack.c.b16 %v431, %v427
    %v512 = vpack.c.b16 %v436, %v432
    %v513 = vpack.c.b16 %v437, %v433
    %v514 = vpack.c.b16 %v438, %v434
    %v515 = vpack.c.b16 %v439, %v435
    %v516 = vpack.c.b16 %v444, %v440
    %v517 = vpack.c.b16 %v445, %v441
    %v518 = vpack.c.b16 %v446, %v442
    %v519 = vpack.c.b16 %v447, %v443
    %v520 = vpack.c.b16 %v452, %v448
    %v521 = vpack.c.b16 %v453, %v449
    %v522 = vpack.c.b16 %v454, %v450
    %v523 = vpack.c.b16 %v455, %v451
    %v524 = vpack.c.b16 %v460, %v456
    %v525 = vpack.c.b16 %v461, %v457
    %v526 = vpack.c.b16 %v462, %v458
    %v527 = vpack.c.b16 %v463, %v459
    %592 = vmatpush.bf16.msra.mxu0 %v492
    %593 = vmatpush.bf16.msra.mxu0 %v488
    %594 = vmatpush.bf16.msra.mxu0 %v484
    %595 = vmatpush.bf16.msra.mxu0 %v480
    %596 = vmatpush.bf16.msra.mxu0 %v476
    %597 = vmatpush.bf16.msra.mxu0 %v472
    %598 = vmatpush.bf16.msra.mxu0 %v468
    %599 = vmatpush.bf16.msra.mxu0 %v464
    %600 = vmatmul.bf16.gmra.mxu0 %v196
    %v601 = vpop.f32.mrf.mxu0
    %v602 = vadd.f32 %v264, %v601
    %v603 = vpop.f32.mrf.mxu0
    %v604 = vadd.f32 %v264, %v603
    %605 = vdwg.mxu0
    %606 = vmatpush.bf16.msra.mxu0 %v524
    %607 = vmatpush.bf16.msra.mxu0 %v520
    %608 = vmatpush.bf16.msra.mxu0 %v516
    %609 = vmatpush.bf16.msra.mxu0 %v512
    %610 = vmatpush.bf16.msra.mxu0 %v508
    %611 = vmatpush.bf16.msra.mxu0 %v504
    %612 = vmatpush.bf16.msra.mxu0 %v500
    %613 = vmatpush.bf16.msra.mxu0 %v496
    %614 = vmatmul.bf16.gmra.mxu0 %v197
    %v615 = vpop.f32.mrf.mxu0
    %v616 = vadd.f32 %v602, %v615
    %v617 = vpop.f32.mrf.mxu0
    %v618 = vadd.f32 %v604, %v617
    %619 = vdwg.mxu0
    %620 = vmatpush.bf16.msra.mxu0 %v493
    %621 = vmatpush.bf16.msra.mxu0 %v489
    %622 = vmatpush.bf16.msra.mxu0 %v485
    %623 = vmatpush.bf16.msra.mxu0 %v481
    %624 = vmatpush.bf16.msra.mxu0 %v477
    %625 = vmatpush.bf16.msra.mxu0 %v473
    %626 = vmatpush.bf16.msra.mxu0 %v469
    %627 = vmatpush.bf16.msra.mxu0 %v465
    %628 = vmatmul.bf16.gmra.mxu0 %v196
    %v629 = vpop.f32.mrf.mxu0
    %v630 = vadd.f32 %v265, %v629
    %v631 = vpop.f32.mrf.mxu0
    %v632 = vadd.f32 %v265, %v631
    %633 = vdwg.mxu0
    %634 = vmatpush.bf16.msra.mxu0 %v525
    %635 = vmatpush.bf16.msra.mxu0 %v521
    %636 = vmatpush.bf16.msra.mxu0 %v517
    %637 = vmatpush.bf16.msra.mxu0 %v513
    %638 = vmatpush.bf16.msra.mxu0 %v509
    %639 = vmatpush.bf16.msra.mxu0 %v505
    %640 = vmatpush.bf16.msra.mxu0 %v501
    %641 = vmatpush.bf16.msra.mxu0 %v497
    %642 = vmatmul.bf16.gmra.mxu0 %v197
    %v643 = vpop.f32.mrf.mxu0
    %v644 = vadd.f32 %v630, %v643
    %v645 = vpop.f32.mrf.mxu0
    %v646 = vadd.f32 %v632, %v645
    %647 = vdwg.mxu0
    %648 = vmatpush.bf16.msra.mxu0 %v494
    %649 = vmatpush.bf16.msra.mxu0 %v490
    %650 = vmatpush.bf16.msra.mxu0 %v486
    %651 = vmatpush.bf16.msra.mxu0 %v482
    %652 = vmatpush.bf16.msra.mxu0 %v478
    %653 = vmatpush.bf16.msra.mxu0 %v474
    %654 = vmatpush.bf16.msra.mxu0 %v470
    %655 = vmatpush.bf16.msra.mxu0 %v466
    %656 = vmatmul.bf16.gmra.mxu0 %v196
    %v657 = vpop.f32.mrf.mxu0
    %v658 = vadd.f32 %v266, %v657
    %v659 = vpop.f32.mrf.mxu0
    %v660 = vadd.f32 %v266, %v659
    %661 = vdwg.mxu0
    %662 = vmatpush.bf16.msra.mxu0 %v526
    %663 = vmatpush.bf16.msra.mxu0 %v522
    %664 = vmatpush.bf16.msra.mxu0 %v518
    %665 = vmatpush.bf16.msra.mxu0 %v514
    %666 = vmatpush.bf16.msra.mxu0 %v510
    %667 = vmatpush.bf16.msra.mxu0 %v506
    %668 = vmatpush.bf16.msra.mxu0 %v502
    %669 = vmatpush.bf16.msra.mxu0 %v498
    %670 = vmatmul.bf16.gmra.mxu0 %v197
    %v671 = vpop.f32.mrf.mxu0
    %v672 = vadd.f32 %v658, %v671
    %v673 = vpop.f32.mrf.mxu0
    %v674 = vadd.f32 %v660, %v673
    %675 = vdwg.mxu0
    %676 = vmatpush.bf16.msra.mxu0 %v495
    %677 = vmatpush.bf16.msra.mxu0 %v491
    %678 = vmatpush.bf16.msra.mxu0 %v487
    %679 = vmatpush.bf16.msra.mxu0 %v483
    %680 = vmatpush.bf16.msra.mxu0 %v479
    %681 = vmatpush.bf16.msra.mxu0 %v475
    %682 = vmatpush.bf16.msra.mxu0 %v471
    %683 = vmatpush.bf16.msra.mxu0 %v467
    %684 = vmatmul.bf16.gmra.mxu0 %v196
    %v685 = vpop.f32.mrf.mxu0
    %v686 = vadd.f32 %v267, %v685
    %v687 = vpop.f32.mrf.mxu0
    %v688 = vadd.f32 %v267, %v687
    %689 = vdwg.mxu0
    %690 = vmatpush.bf16.msra.mxu0 %v527
    %691 = vmatpush.bf16.msra.mxu0 %v523
    %692 = vmatpush.bf16.msra.mxu0 %v519
    %693 = vmatpush.bf16.msra.mxu0 %v515
    %694 = vmatpush.bf16.msra.mxu0 %v511
    %695 = vmatpush.bf16.msra.mxu0 %v507
    %696 = vmatpush.bf16.msra.mxu0 %v503
    %697 = vmatpush.bf16.msra.mxu0 %v499
    %698 = vmatmul.bf16.gmra.mxu0 %v197
    %v699 = vpop.f32.mrf.mxu0
    %v700 = vadd.f32 %v686, %v699
    %v701 = vpop.f32.mrf.mxu0
    %v702 = vadd.f32 %v688, %v701
    %703 = vdwg.mxu0
    %v704 = vmul.f32 %v616, 0.5
    %v705 = vmul.f32 %v644, 0.5
    %v706 = vmul.f32 %v672, 0.5
    %v707 = vmul.f32 %v700, 0.5
    %v708 = vmul.f32 %v618, 0.5
    %v709 = vmul.f32 %v646, 0.5
    %v710 = vmul.f32 %v674, 0.5
    %v711 = vmul.f32 %v702, 0.5
    %v712 = vmul.f32 %v616, 0.70710677
    %v713 = vmul.f32 %v644, 0.70710677
    %v714 = vmul.f32 %v672, 0.70710677
    %v715 = vmul.f32 %v700, 0.70710677
    %v716 = vmul.f32 %v618, 0.70710677
    %v717 = vmul.f32 %v646, 0.70710677
    %v718 = vmul.f32 %v674, 0.70710677
    %v719 = vmul.f32 %v702, 0.70710677
    %v720 = vand.u32 2147483647, %v712
    %v721 = vand.u32 2147483647, %v713
    %v722 = vand.u32 2147483647, %v714
    %v723 = vand.u32 2147483647, %v715
    %v724 = vand.u32 2147483647, %v716
    %v725 = vand.u32 2147483647, %v717
    %v726 = vand.u32 2147483647, %v718
    %v727 = vand.u32 2147483647, %v719
    %v728 = vmul.f32 %v720, 0.3275911
    %v729 = vmul.f32 %v721, 0.3275911
    %v730 = vmul.f32 %v722, 0.3275911
    %v731 = vmul.f32 %v723, 0.3275911
    %v732 = vmul.f32 %v724, 0.3275911
    %v733 = vmul.f32 %v725, 0.3275911
    %v734 = vmul.f32 %v726, 0.3275911
    %v735 = vmul.f32 %v727, 0.3275911
    %v736 = vadd.f32 %v728, 1.0
    %v737 = vadd.f32 %v729, 1.0
    %v738 = vadd.f32 %v730, 1.0
    %v739 = vadd.f32 %v731, 1.0
    %v740 = vadd.f32 %v732, 1.0
    %v741 = vadd.f32 %v733, 1.0
    %v742 = vadd.f32 %v734, 1.0
    %v743 = vadd.f32 %v735, 1.0
    %v744 = vrcp.pop %v736
    %v745 = vrcp.pop %v737
    %v746 = vrcp.pop %v738
    %v747 = vrcp.pop %v739
    %v748 = vrcp.pop %v740
    %v749 = vrcp.pop %v741
    %v750 = vrcp.pop %v742
    %v751 = vrcp.pop %v743
    %v752 = vmul.f32 %v744, 1.0614054
    %v753 = vmul.f32 %v745, 1.0614054
    %v754 = vmul.f32 %v746, 1.0614054
    %v755 = vmul.f32 %v747, 1.0614054
    %v756 = vmul.f32 %v748, 1.0614054
    %v757 = vmul.f32 %v749, 1.0614054
    %v758 = vmul.f32 %v750, 1.0614054
    %v759 = vmul.f32 %v751, 1.0614054
    %v760 = vadd.f32 %v752, -1.4531521
    %v761 = vadd.f32 %v753, -1.4531521
    %v762 = vadd.f32 %v754, -1.4531521
    %v763 = vadd.f32 %v755, -1.4531521
    %v764 = vadd.f32 %v756, -1.4531521
    %v765 = vadd.f32 %v757, -1.4531521
    %v766 = vadd.f32 %v758, -1.4531521
    %v767 = vadd.f32 %v759, -1.4531521
    %v768 = vmul.f32 %v760, %v744
    %v769 = vmul.f32 %v761, %v745
    %v770 = vmul.f32 %v762, %v746
    %v771 = vmul.f32 %v763, %v747
    %v772 = vmul.f32 %v764, %v748
    %v773 = vmul.f32 %v765, %v749
    %v774 = vmul.f32 %v766, %v750
    %v775 = vmul.f32 %v767, %v751
    %v776 = vadd.f32 %v768, 1.4214138
    %v777 = vadd.f32 %v769, 1.4214138
    %v778 = vadd.f32 %v770, 1.4214138
    %v779 = vadd.f32 %v771, 1.4214138
    %v780 = vadd.f32 %v772, 1.4214138
    %v781 = vadd.f32 %v773, 1.4214138
    %v782 = vadd.f32 %v774, 1.4214138
    %v783 = vadd.f32 %v775, 1.4214138
    %v784 = vmul.f32 %v776, %v744
    %v785 = vmul.f32 %v777, %v745
    %v786 = vmul.f32 %v778, %v746
    %v787 = vmul.f32 %v779, %v747
    %v788 = vmul.f32 %v780, %v748
    %v789 = vmul.f32 %v781, %v749
    %v790 = vmul.f32 %v782, %v750
    %v791 = vmul.f32 %v783, %v751
    %v792 = vadd.f32 %v784, -0.28449672
    %v793 = vadd.f32 %v785, -0.28449672
    %v794 = vadd.f32 %v786, -0.28449672
    %v795 = vadd.f32 %v787, -0.28449672
    %v796 = vadd.f32 %v788, -0.28449672
    %v797 = vadd.f32 %v789, -0.28449672
    %v798 = vadd.f32 %v790, -0.28449672
    %v799 = vadd.f32 %v791, -0.28449672
    %v800 = vmul.f32 %v792, %v744
    %v801 = vmul.f32 %v793, %v745
    %v802 = vmul.f32 %v794, %v746
    %v803 = vmul.f32 %v795, %v747
    %v804 = vmul.f32 %v796, %v748
    %v805 = vmul.f32 %v797, %v749
    %v806 = vmul.f32 %v798, %v750
    %v807 = vmul.f32 %v799, %v751
    %v808 = vadd.f32 %v800, 0.2548296
    %v809 = vadd.f32 %v801, 0.2548296
    %v810 = vadd.f32 %v802, 0.2548296
    %v811 = vadd.f32 %v803, 0.2548296
    %v812 = vadd.f32 %v804, 0.2548296
    %v813 = vadd.f32 %v805, 0.2548296
    %v814 = vadd.f32 %v806, 0.2548296
    %v815 = vadd.f32 %v807, 0.2548296
    %v816 = vmul.f32 %v808, %v744
    %v817 = vmul.f32 %v809, %v745
    %v818 = vmul.f32 %v810, %v746
    %v819 = vmul.f32 %v811, %v747
    %v820 = vmul.f32 %v812, %v748
    %v821 = vmul.f32 %v813, %v749
    %v822 = vmul.f32 %v814, %v750
    %v823 = vmul.f32 %v815, %v751
    %v824 = vsub.f32 0.0, %v720
    %v825 = vsub.f32 0.0, %v721
    %v826 = vsub.f32 0.0, %v722
    %v827 = vsub.f32 0.0, %v723
    %v828 = vsub.f32 0.0, %v724
    %v829 = vsub.f32 0.0, %v725
    %v830 = vsub.f32 0.0, %v726
    %v831 = vsub.f32 0.0, %v727
    %v832 = vmul.f32 %v824, %v720
    %v833 = vmul.f32 %v825, %v721
    %v834 = vmul.f32 %v826, %v722
    %v835 = vmul.f32 %v827, %v723
    %v836 = vmul.f32 %v828, %v724
    %v837 = vmul.f32 %v829, %v725
    %v838 = vmul.f32 %v830, %v726
    %v839 = vmul.f32 %v831, %v727
    %v840 = vmul.f32 %v832, 1.442695
    %v841 = vpow.pop %v840
    %v842 = vmul.f32 %v833, 1.442695
    %v843 = vpow.pop %v842
    %v844 = vmul.f32 %v834, 1.442695
    %v845 = vpow.pop %v844
    %v846 = vmul.f32 %v835, 1.442695
    %v847 = vpow.pop %v846
    %v848 = vmul.f32 %v836, 1.442695
    %v849 = vpow.pop %v848
    %v850 = vmul.f32 %v837, 1.442695
    %v851 = vpow.pop %v850
    %v852 = vmul.f32 %v838, 1.442695
    %v853 = vpow.pop %v852
    %v854 = vmul.f32 %v839, 1.442695
    %v855 = vpow.pop %v854
    %v856 = vmul.f32 %v816, %v841
    %v857 = vmul.f32 %v817, %v843
    %v858 = vmul.f32 %v818, %v845
    %v859 = vmul.f32 %v819, %v847
    %v860 = vmul.f32 %v820, %v849
    %v861 = vmul.f32 %v821, %v851
    %v862 = vmul.f32 %v822, %v853
    %v863 = vmul.f32 %v823, %v855
    %v864 = vsub.f32 1.0, %v856
    %v865 = vsub.f32 1.0, %v857
    %v866 = vsub.f32 1.0, %v858
    %v867 = vsub.f32 1.0, %v859
    %v868 = vsub.f32 1.0, %v860
    %v869 = vsub.f32 1.0, %v861
    %v870 = vsub.f32 1.0, %v862
    %v871 = vsub.f32 1.0, %v863
    %vm872 = vcmp.ge.f32.partialorder %v712, 0.0
    %vm873 = vcmp.ge.f32.partialorder %v713, 0.0
    %vm874 = vcmp.ge.f32.partialorder %v714, 0.0
    %vm875 = vcmp.ge.f32.partialorder %v715, 0.0
    %vm876 = vcmp.ge.f32.partialorder %v716, 0.0
    %vm877 = vcmp.ge.f32.partialorder %v717, 0.0
    %vm878 = vcmp.ge.f32.partialorder %v718, 0.0
    %vm879 = vcmp.ge.f32.partialorder %v719, 0.0
    %v880 = vsub.f32 0.0, %v864
    %v881 = vsub.f32 0.0, %v865
    %v882 = vsub.f32 0.0, %v866
    %v883 = vsub.f32 0.0, %v867
    %v884 = vsub.f32 0.0, %v868
    %v885 = vsub.f32 0.0, %v869
    %v886 = vsub.f32 0.0, %v870
    %v887 = vsub.f32 0.0, %v871
    %v888 = vsel %vm872, %v864, %v880
    %v889 = vsel %vm873, %v865, %v881
    %v890 = vsel %vm874, %v866, %v882
    %v891 = vsel %vm875, %v867, %v883
    %v892 = vsel %vm876, %v868, %v884
    %v893 = vsel %vm877, %v869, %v885
    %v894 = vsel %vm878, %v870, %v886
    %v895 = vsel %vm879, %v871, %v887
    %v896 = vadd.f32 %v888, 1.0
    %v897 = vadd.f32 %v889, 1.0
    %v898 = vadd.f32 %v890, 1.0
    %v899 = vadd.f32 %v891, 1.0
    %v900 = vadd.f32 %v892, 1.0
    %v901 = vadd.f32 %v893, 1.0
    %v902 = vadd.f32 %v894, 1.0
    %v903 = vadd.f32 %v895, 1.0
    %v904 = vmul.f32 %v704, %v896
    %v905 = vmul.f32 %v705, %v897
    %v906 = vmul.f32 %v706, %v898
    %v907 = vmul.f32 %v707, %v899
    %v908 = vmul.f32 %v708, %v900
    %v909 = vmul.f32 %v709, %v901
    %v910 = vmul.f32 %v710, %v902
    %v911 = vmul.f32 %v711, %v903
    %v912 = vpack.c.bf16 %v908, %v904
    %v913 = vpack.c.bf16 %v909, %v905
    %v914 = vpack.c.bf16 %v910, %v906
    %v915 = vpack.c.bf16 %v911, %v907
    %v916 = vld [vmem:[#allocation11] sm:$0xff]
    %v917 = vld [vmem:[#allocation11 + $0x8] sm:$0xff]
    %v918 = vld [vmem:[#allocation11 + $0x10] sm:$0xff]
    %v919 = vld [vmem:[#allocation11 + $0x18] sm:$0xff]
    %v920 = vld [vmem:[#allocation11 + $0x20] sm:$0xff]
    %v921 = vld [vmem:[#allocation11 + $0x28] sm:$0xff]
    %v922 = vld [vmem:[#allocation11 + $0x30] sm:$0xff]
    %v923 = vld [vmem:[#allocation11 + $0x38] sm:$0xff]
    %v924 = vld [vmem:[#allocation11 + $0x40] sm:$0xff]
    %v925 = vld [vmem:[#allocation11 + $0x48] sm:$0xff]
    %v926 = vld [vmem:[#allocation11 + $0x50] sm:$0xff]
    %v927 = vld [vmem:[#allocation11 + $0x58] sm:$0xff]
    %v928 = vld [vmem:[#allocation11 + $0x60] sm:$0xff]
    %v929 = vld [vmem:[#allocation11 + $0x68] sm:$0xff]
    %v930 = vld [vmem:[#allocation11 + $0x70] sm:$0xff]
    %v931 = vld [vmem:[#allocation11 + $0x78] sm:$0xff]
    %v932 = vld [vmem:[#allocation11 + $0x80] sm:$0xff]
    %v933 = vld [vmem:[#allocation11 + $0x88] sm:$0xff]
    %v934 = vld [vmem:[#allocation11 + $0x90] sm:$0xff]
    %v935 = vld [vmem:[#allocation11 + $0x98] sm:$0xff]
    %v936 = vld [vmem:[#allocation11 + $0xa0] sm:$0xff]
    %v937 = vld [vmem:[#allocation11 + $0xa8] sm:$0xff]
    %v938 = vld [vmem:[#allocation11 + $0xb0] sm:$0xff]
    %v939 = vld [vmem:[#allocation11 + $0xb8] sm:$0xff]
    %v940 = vld [vmem:[#allocation11 + $0xc0] sm:$0xff]
    %v941 = vld [vmem:[#allocation11 + $0xc8] sm:$0xff]
    %v942 = vld [vmem:[#allocation11 + $0xd0] sm:$0xff]
    %v943 = vld [vmem:[#allocation11 + $0xd8] sm:$0xff]
    %v944 = vld [vmem:[#allocation11 + $0xe0] sm:$0xff]
    %v945 = vld [vmem:[#allocation11 + $0xe8] sm:$0xff]
    %v946 = vld [vmem:[#allocation11 + $0xf0] sm:$0xff]
    %v947 = vld [vmem:[#allocation11 + $0xf8] sm:$0xff]
    %v948 = vld [vmem:[#allocation11 + $0x100] sm:$0xff]
    %v949 = vld [vmem:[#allocation11 + $0x108] sm:$0xff]
    %v950 = vld [vmem:[#allocation11 + $0x110] sm:$0xff]
    %v951 = vld [vmem:[#allocation11 + $0x118] sm:$0xff]
    %v952 = vld [vmem:[#allocation11 + $0x120] sm:$0xff]
    %v953 = vld [vmem:[#allocation11 + $0x128] sm:$0xff]
    %v954 = vld [vmem:[#allocation11 + $0x130] sm:$0xff]
    %v955 = vld [vmem:[#allocation11 + $0x138] sm:$0xff]
    %v956 = vld [vmem:[#allocation11 + $0x140] sm:$0xff]
    %v957 = vld [vmem:[#allocation11 + $0x148] sm:$0xff]
    %v958 = vld [vmem:[#allocation11 + $0x150] sm:$0xff]
    %v959 = vld [vmem:[#allocation11 + $0x158] sm:$0xff]
    %v960 = vld [vmem:[#allocation11 + $0x160] sm:$0xff]
    %v961 = vld [vmem:[#allocation11 + $0x168] sm:$0xff]
    %v962 = vld [vmem:[#allocation11 + $0x170] sm:$0xff]
    %v963 = vld [vmem:[#allocation11 + $0x178] sm:$0xff]
    %v964 = vld [vmem:[#allocation11 + $0x180] sm:$0xff]
    %v965 = vld [vmem:[#allocation11 + $0x188] sm:$0xff]
    %v966 = vld [vmem:[#allocation11 + $0x190] sm:$0xff]
    %v967 = vld [vmem:[#allocation11 + $0x198] sm:$0xff]
    %v968 = vld [vmem:[#allocation11 + $0x1a0] sm:$0xff]
    %v969 = vld [vmem:[#allocation11 + $0x1a8] sm:$0xff]
    %v970 = vld [vmem:[#allocation11 + $0x1b0] sm:$0xff]
    %v971 = vld [vmem:[#allocation11 + $0x1b8] sm:$0xff]
    %v972 = vld [vmem:[#allocation11 + $0x1c0] sm:$0xff]
    %v973 = vld [vmem:[#allocation11 + $0x1c8] sm:$0xff]
    %v974 = vld [vmem:[#allocation11 + $0x1d0] sm:$0xff]
    %v975 = vld [vmem:[#allocation11 + $0x1d8] sm:$0xff]
    %v976 = vld [vmem:[#allocation11 + $0x1e0] sm:$0xff]
    %v977 = vld [vmem:[#allocation11 + $0x1e8] sm:$0xff]
    %v978 = vld [vmem:[#allocation11 + $0x1f0] sm:$0xff]
    %v979 = vld [vmem:[#allocation11 + $0x1f8] sm:$0xff]
    %v980 = vld [vmem:[%s6] sm:$0x3]
    %v982 = vperm.slane %v980, 0
    %v983 = vperm.slane %v980, 1
    %v1050 = vunpack.c.l.b16 %v916
    %v1051 = vunpack.c.h.b16 %v916
    %v1052 = vunpack.c.l.b16 %v917
    %v1053 = vunpack.c.h.b16 %v917
    %v1054 = vunpack.c.l.b16 %v918
    %v1055 = vunpack.c.h.b16 %v918
    %v1056 = vunpack.c.l.b16 %v919
    %v1057 = vunpack.c.h.b16 %v919
    %v1058 = vunpack.c.l.b16 %v920
    %v1059 = vunpack.c.h.b16 %v920
    %v1060 = vunpack.c.l.b16 %v921
    %v1061 = vunpack.c.h.b16 %v921
    %v1062 = vunpack.c.l.b16 %v922
    %v1063 = vunpack.c.h.b16 %v922
    %v1064 = vunpack.c.l.b16 %v923
    %v1065 = vunpack.c.h.b16 %v923
    %v1066 = vunpack.c.l.b16 %v924
    %v1067 = vunpack.c.h.b16 %v924
    %v1068 = vunpack.c.l.b16 %v925
    %v1069 = vunpack.c.h.b16 %v925
    %v1070 = vunpack.c.l.b16 %v926
    %v1071 = vunpack.c.h.b16 %v926
    %v1072 = vunpack.c.l.b16 %v927
    %v1073 = vunpack.c.h.b16 %v927
    %v1074 = vunpack.c.l.b16 %v928
    %v1075 = vunpack.c.h.b16 %v928
    %v1076 = vunpack.c.l.b16 %v929
    %v1077 = vunpack.c.h.b16 %v929
    %v1078 = vunpack.c.l.b16 %v930
    %v1079 = vunpack.c.h.b16 %v930
    %v1080 = vunpack.c.l.b16 %v931
    %v1081 = vunpack.c.h.b16 %v931
    %v1082 = vunpack.c.l.b16 %v932
    %v1083 = vunpack.c.h.b16 %v932
    %v1084 = vunpack.c.l.b16 %v933
    %v1085 = vunpack.c.h.b16 %v933
    %v1086 = vunpack.c.l.b16 %v934
    %v1087 = vunpack.c.h.b16 %v934
    %v1088 = vunpack.c.l.b16 %v935
    %v1089 = vunpack.c.h.b16 %v935
    %v1090 = vunpack.c.l.b16 %v936
    %v1091 = vunpack.c.h.b16 %v936
    %v1092 = vunpack.c.l.b16 %v937
    %v1093 = vunpack.c.h.b16 %v937
    %v1094 = vunpack.c.l.b16 %v938
    %v1095 = vunpack.c.h.b16 %v938
    %v1096 = vunpack.c.l.b16 %v939
    %v1097 = vunpack.c.h.b16 %v939
    %v1098 = vunpack.c.l.b16 %v940
    %v1099 = vunpack.c.h.b16 %v940
    %v1100 = vunpack.c.l.b16 %v941
    %v1101 = vunpack.c.h.b16 %v941
    %v1102 = vunpack.c.l.b16 %v942
    %v1103 = vunpack.c.h.b16 %v942
    %v1104 = vunpack.c.l.b16 %v943
    %v1105 = vunpack.c.h.b16 %v943
    %v1106 = vunpack.c.l.b16 %v944
    %v1107 = vunpack.c.h.b16 %v944
    %v1108 = vunpack.c.l.b16 %v945
    %v1109 = vunpack.c.h.b16 %v945
    %v1110 = vunpack.c.l.b16 %v946
    %v1111 = vunpack.c.h.b16 %v946
    %v1112 = vunpack.c.l.b16 %v947
    %v1113 = vunpack.c.h.b16 %v947
    %v1114 = vunpack.c.l.b16 %v948
    %v1115 = vunpack.c.h.b16 %v948
    %v1116 = vunpack.c.l.b16 %v949
    %v1117 = vunpack.c.h.b16 %v949
    %v1118 = vunpack.c.l.b16 %v950
    %v1119 = vunpack.c.h.b16 %v950
    %v1120 = vunpack.c.l.b16 %v951
    %v1121 = vunpack.c.h.b16 %v951
    %v1122 = vunpack.c.l.b16 %v952
    %v1123 = vunpack.c.h.b16 %v952
    %v1124 = vunpack.c.l.b16 %v953
    %v1125 = vunpack.c.h.b16 %v953
    %v1126 = vunpack.c.l.b16 %v954
    %v1127 = vunpack.c.h.b16 %v954
    %v1128 = vunpack.c.l.b16 %v955
    %v1129 = vunpack.c.h.b16 %v955
    %v1130 = vunpack.c.l.b16 %v956
    %v1131 = vunpack.c.h.b16 %v956
    %v1132 = vunpack.c.l.b16 %v957
    %v1133 = vunpack.c.h.b16 %v957
    %v1134 = vunpack.c.l.b16 %v958
    %v1135 = vunpack.c.h.b16 %v958
    %v1136 = vunpack.c.l.b16 %v959
    %v1137 = vunpack.c.h.b16 %v959
    %v1138 = vunpack.c.l.b16 %v960
    %v1139 = vunpack.c.h.b16 %v960
    %v1140 = vunpack.c.l.b16 %v961
    %v1141 = vunpack.c.h.b16 %v961
    %v1142 = vunpack.c.l.b16 %v962
    %v1143 = vunpack.c.h.b16 %v962
    %v1144 = vunpack.c.l.b16 %v963
    %v1145 = vunpack.c.h.b16 %v963
    %v1146 = vunpack.c.l.b16 %v964
    %v1147 = vunpack.c.h.b16 %v964
    %v1148 = vunpack.c.l.b16 %v965
    %v1149 = vunpack.c.h.b16 %v965
    %v1150 = vunpack.c.l.b16 %v966
    %v1151 = vunpack.c.h.b16 %v966
    %v1152 = vunpack.c.l.b16 %v967
    %v1153 = vunpack.c.h.b16 %v967
    %v1154 = vunpack.c.l.b16 %v968
    %v1155 = vunpack.c.h.b16 %v968
    %v1156 = vunpack.c.l.b16 %v969
    %v1157 = vunpack.c.h.b16 %v969
    %v1158 = vunpack.c.l.b16 %v970
    %v1159 = vunpack.c.h.b16 %v970
    %v1160 = vunpack.c.l.b16 %v971
    %v1161 = vunpack.c.h.b16 %v971
    %v1162 = vunpack.c.l.b16 %v972
    %v1163 = vunpack.c.h.b16 %v972
    %v1164 = vunpack.c.l.b16 %v973
    %v1165 = vunpack.c.h.b16 %v973
    %v1166 = vunpack.c.l.b16 %v974
    %v1167 = vunpack.c.h.b16 %v974
    %v1168 = vunpack.c.l.b16 %v975
    %v1169 = vunpack.c.h.b16 %v975
    %v1170 = vunpack.c.l.b16 %v976
    %v1171 = vunpack.c.h.b16 %v976
    %v1172 = vunpack.c.l.b16 %v977
    %v1173 = vunpack.c.h.b16 %v977
    %v1174 = vunpack.c.l.b16 %v978
    %v1175 = vunpack.c.h.b16 %v978
    %v1176 = vunpack.c.l.b16 %v979
    %v1177 = vunpack.c.h.b16 %v979
    %v1178 = vpack.c.b16 %v1052, %v1050
    %v1179 = vpack.c.b16 %v1053, %v1051
    %v1180 = vpack.c.b16 %v1056, %v1054
    %v1181 = vpack.c.b16 %v1057, %v1055
    %v1182 = vpack.c.b16 %v1060, %v1058
    %v1183 = vpack.c.b16 %v1061, %v1059
    %v1184 = vpack.c.b16 %v1064, %v1062
    %v1185 = vpack.c.b16 %v1065, %v1063
    %v1186 = vpack.c.b16 %v1068, %v1066
    %v1187 = vpack.c.b16 %v1069, %v1067
    %v1188 = vpack.c.b16 %v1072, %v1070
    %v1189 = vpack.c.b16 %v1073, %v1071
    %v1190 = vpack.c.b16 %v1076, %v1074
    %v1191 = vpack.c.b16 %v1077, %v1075
    %v1192 = vpack.c.b16 %v1080, %v1078
    %v1193 = vpack.c.b16 %v1081, %v1079
    %v1194 = vpack.c.b16 %v1084, %v1082
    %v1195 = vpack.c.b16 %v1085, %v1083
    %v1196 = vpack.c.b16 %v1088, %v1086
    %v1197 = vpack.c.b16 %v1089, %v1087
    %v1198 = vpack.c.b16 %v1092, %v1090
    %v1199 = vpack.c.b16 %v1093, %v1091
    %v1200 = vpack.c.b16 %v1096, %v1094
    %v1201 = vpack.c.b16 %v1097, %v1095
    %v1202 = vpack.c.b16 %v1100, %v1098
    %v1203 = vpack.c.b16 %v1101, %v1099
    %v1204 = vpack.c.b16 %v1104, %v1102
    %v1205 = vpack.c.b16 %v1105, %v1103
    %v1206 = vpack.c.b16 %v1108, %v1106
    %v1207 = vpack.c.b16 %v1109, %v1107
    %v1208 = vpack.c.b16 %v1112, %v1110
    %v1209 = vpack.c.b16 %v1113, %v1111
    %v1210 = vpack.c.b16 %v1116, %v1114
    %v1211 = vpack.c.b16 %v1117, %v1115
    %v1212 = vpack.c.b16 %v1120, %v1118
    %v1213 = vpack.c.b16 %v1121, %v1119
    %v1214 = vpack.c.b16 %v1124, %v1122
    %v1215 = vpack.c.b16 %v1125, %v1123
    %v1216 = vpack.c.b16 %v1128, %v1126
    %v1217 = vpack.c.b16 %v1129, %v1127
    %v1218 = vpack.c.b16 %v1132, %v1130
    %v1219 = vpack.c.b16 %v1133, %v1131
    %v1220 = vpack.c.b16 %v1136, %v1134
    %v1221 = vpack.c.b16 %v1137, %v1135
    %v1222 = vpack.c.b16 %v1140, %v1138
    %v1223 = vpack.c.b16 %v1141, %v1139
    %v1224 = vpack.c.b16 %v1144, %v1142
    %v1225 = vpack.c.b16 %v1145, %v1143
    %v1226 = vpack.c.b16 %v1148, %v1146
    %v1227 = vpack.c.b16 %v1149, %v1147
    %v1228 = vpack.c.b16 %v1152, %v1150
    %v1229 = vpack.c.b16 %v1153, %v1151
    %v1230 = vpack.c.b16 %v1156, %v1154
    %v1231 = vpack.c.b16 %v1157, %v1155
    %v1232 = vpack.c.b16 %v1160, %v1158
    %v1233 = vpack.c.b16 %v1161, %v1159
    %v1234 = vpack.c.b16 %v1164, %v1162
    %v1235 = vpack.c.b16 %v1165, %v1163
    %v1236 = vpack.c.b16 %v1168, %v1166
    %v1237 = vpack.c.b16 %v1169, %v1167
    %v1238 = vpack.c.b16 %v1172, %v1170
    %v1239 = vpack.c.b16 %v1173, %v1171
    %v1240 = vpack.c.b16 %v1176, %v1174
    %v1241 = vpack.c.b16 %v1177, %v1175
    %1306 = vmatpush.bf16.msra.mxu0 %v1192
    %1307 = vmatpush.bf16.msra.mxu0 %v1190
    %1308 = vmatpush.bf16.msra.mxu0 %v1188
    %1309 = vmatpush.bf16.msra.mxu0 %v1186
    %1310 = vmatpush.bf16.msra.mxu0 %v1184
    %1311 = vmatpush.bf16.msra.mxu0 %v1182
    %1312 = vmatpush.bf16.msra.mxu0 %v1180
    %1313 = vmatpush.bf16.msra.mxu0 %v1178
    %1314 = vmatmul.bf16.gmra.mxu0 %v912
    %v1315 = vpop.f32.mrf.mxu0
    %v1316 = vadd.f32 %v982, %v1315
    %v1317 = vpop.f32.mrf.mxu0
    %v1318 = vadd.f32 %v982, %v1317
    %1319 = vdwg.mxu0
    %1320 = vmatpush.bf16.msra.mxu0 %v1208
    %1321 = vmatpush.bf16.msra.mxu0 %v1206
    %1322 = vmatpush.bf16.msra.mxu0 %v1204
    %1323 = vmatpush.bf16.msra.mxu0 %v1202
    %1324 = vmatpush.bf16.msra.mxu0 %v1200
    %1325 = vmatpush.bf16.msra.mxu0 %v1198
    %1326 = vmatpush.bf16.msra.mxu0 %v1196
    %1327 = vmatpush.bf16.msra.mxu0 %v1194
    %1328 = vmatmul.bf16.gmra.mxu0 %v913
    %v1329 = vpop.f32.mrf.mxu0
    %v1330 = vadd.f32 %v1316, %v1329
    %v1331 = vpop.f32.mrf.mxu0
    %v1332 = vadd.f32 %v1318, %v1331
    %1333 = vdwg.mxu0
    %1334 = vmatpush.bf16.msra.mxu0 %v1224
    %1335 = vmatpush.bf16.msra.mxu0 %v1222
    %1336 = vmatpush.bf16.msra.mxu0 %v1220
    %1337 = vmatpush.bf16.msra.mxu0 %v1218
    %1338 = vmatpush.bf16.msra.mxu0 %v1216
    %1339 = vmatpush.bf16.msra.mxu0 %v1214
    %1340 = vmatpush.bf16.msra.mxu0 %v1212
    %1341 = vmatpush.bf16.msra.mxu0 %v1210
    %1342 = vmatmul.bf16.gmra.mxu0 %v914
    %v1343 = vpop.f32.mrf.mxu0
    %v1344 = vadd.f32 %v1330, %v1343
    %v1345 = vpop.f32.mrf.mxu0
    %v1346 = vadd.f32 %v1332, %v1345
    %1347 = vdwg.mxu0
    %1348 = vmatpush.bf16.msra.mxu0 %v1240
    %1349 = vmatpush.bf16.msra.mxu0 %v1238
    %1350 = vmatpush.bf16.msra.mxu0 %v1236
    %1351 = vmatpush.bf16.msra.mxu0 %v1234
    %1352 = vmatpush.bf16.msra.mxu0 %v1232
    %1353 = vmatpush.bf16.msra.mxu0 %v1230
    %1354 = vmatpush.bf16.msra.mxu0 %v1228
    %1355 = vmatpush.bf16.msra.mxu0 %v1226
    %1356 = vmatmul.bf16.gmra.mxu0 %v915
    %v1357 = vpop.f32.mrf.mxu0
    %v1358 = vadd.f32 %v1344, %v1357
    %v1359 = vpop.f32.mrf.mxu0
    %v1360 = vadd.f32 %v1346, %v1359
    %1361 = vdwg.mxu0
    %1362 = vmatpush.bf16.msra.mxu0 %v1193
    %1363 = vmatpush.bf16.msra.mxu0 %v1191
    %1364 = vmatpush.bf16.msra.mxu0 %v1189
    %1365 = vmatpush.bf16.msra.mxu0 %v1187
    %1366 = vmatpush.bf16.msra.mxu0 %v1185
    %1367 = vmatpush.bf16.msra.mxu0 %v1183
    %1368 = vmatpush.bf16.msra.mxu0 %v1181
    %1369 = vmatpush.bf16.msra.mxu0 %v1179
    %1370 = vmatmul.bf16.gmra.mxu0 %v912
    %v1371 = vpop.f32.mrf.mxu0
    %v1372 = vadd.f32 %v983, %v1371
    %v1373 = vpop.f32.mrf.mxu0
    %v1374 = vadd.f32 %v983, %v1373
    %1375 = vdwg.mxu0
    %1376 = vmatpush.bf16.msra.mxu0 %v1209
    %1377 = vmatpush.bf16.msra.mxu0 %v1207
    %1378 = vmatpush.bf16.msra.mxu0 %v1205
    %1379 = vmatpush.bf16.msra.mxu0 %v1203
    %1380 = vmatpush.bf16.msra.mxu0 %v1201
    %1381 = vmatpush.bf16.msra.mxu0 %v1199
    %1382 = vmatpush.bf16.msra.mxu0 %v1197
    %1383 = vmatpush.bf16.msra.mxu0 %v1195
    %1384 = vmatmul.bf16.gmra.mxu0 %v913
    %v1385 = vpop.f32.mrf.mxu0
    %v1386 = vadd.f32 %v1372, %v1385
    %v1387 = vpop.f32.mrf.mxu0
    %v1388 = vadd.f32 %v1374, %v1387
    %1389 = vdwg.mxu0
    %1390 = vmatpush.bf16.msra.mxu0 %v1225
    %1391 = vmatpush.bf16.msra.mxu0 %v1223
    %1392 = vmatpush.bf16.msra.mxu0 %v1221
    %1393 = vmatpush.bf16.msra.mxu0 %v1219
    %1394 = vmatpush.bf16.msra.mxu0 %v1217
    %1395 = vmatpush.bf16.msra.mxu0 %v1215
    %1396 = vmatpush.bf16.msra.mxu0 %v1213
    %1397 = vmatpush.bf16.msra.mxu0 %v1211
    %1398 = vmatmul.bf16.gmra.mxu0 %v914
    %v1399 = vpop.f32.mrf.mxu0
    %v1400 = vadd.f32 %v1386, %v1399
    %v1401 = vpop.f32.mrf.mxu0
    %v1402 = vadd.f32 %v1388, %v1401
    %1403 = vdwg.mxu0
    %1404 = vmatpush.bf16.msra.mxu0 %v1241
    %1405 = vmatpush.bf16.msra.mxu0 %v1239
    %1406 = vmatpush.bf16.msra.mxu0 %v1237
    %1407 = vmatpush.bf16.msra.mxu0 %v1235
    %1408 = vmatpush.bf16.msra.mxu0 %v1233
    %1409 = vmatpush.bf16.msra.mxu0 %v1231
    %1410 = vmatpush.bf16.msra.mxu0 %v1229
    %1411 = vmatpush.bf16.msra.mxu0 %v1227
    %1412 = vmatmul.bf16.gmra.mxu0 %v915
    %v1413 = vpop.f32.mrf.mxu0
    %v1414 = vadd.f32 %v1400, %v1413
    %v1415 = vpop.f32.mrf.mxu0
    %v1416 = vadd.f32 %v1402, %v1415
    %1417 = vdwg.mxu0
    %1418 = vst [vmem:[#allocation13] sm:$0xff] %v1358
    %1419 = vst [vmem:[#allocation13 + $0x8] sm:$0xff] %v1414
    %1420 = vst [vmem:[#allocation13 + $0x10] sm:$0xff] %v1360
    %1421 = vst [vmem:[#allocation13 + $0x18] sm:$0xff] %v1416
    // Predicated region
    $region54: #{tpu_custom_call.1} parent=1 // pred_check
      _
    $region55: #{tpu_custom_call.1} parent=1 // pred_check_branch
      %1423 = sbr.rel (0) target = $region57
    $region56: #{tpu_custom_call.1} parent=1 // pred_region
      %1425 = vsyncadd [#allocation4], 0
      %s1426 = sshll.u32 [#allocation13], 4
      %s1427 = int_to_ptr.vmem [resolvable:$true] %s1426
      %s1428 = sshll.u32 %s7, 4
      %s1429 = int_to_ptr.hbm [resolvable:$true] %s1428
      %1434 = dma.vmem_to_hbm [thread:$0]  %s1427, 512, %s1429, [#allocation4], 256, 256, 16
    $region57: #{tpu_custom_call.1} parent=1 // pred_fallthru
      _
    // Predicated region
    $region58: #{tpu_custom_call.1} parent=1 // pred_check
      _
    $region59: #{tpu_custom_call.1} parent=1 // pred_check_branch
      %1436 = sbr.rel (0) target = $region61
    $region60: #{tpu_custom_call.1} parent=1 // pred_region
      %1438 = dma.done [#allocation4], 512
    $region61: #{tpu_custom_call.1} parent=1 // pred_fallthru
      _
    %1439 = vsyncpa [#allocation3], 1
    %1440 = vsyncpa [#allocation6], 1
    %1441 = vsyncpa [#allocation9], 1
    %1442 = vsyncpa [#allocation12], 1
    %1443 = vsyncpa [#allocation4], 1

</llo_original>
